<compile_context>
chip_gen: v7x
topology: tpu7x:2x2x1
jax: 0.10.0
libtpu: 0.0.40
codegen_flags: <defaults>
</compile_context>

<pallas_src>
import jax
import jax.numpy as jnp
from jax.experimental import pallas as pl
from jax.experimental.pallas import tpu as pltpu

IN_FEATURES = 28 * 28   # 784
HID = 512
N_CLASSES = 10
N_PAD = 128             # 10 -> 128 for lane-dense output stores
HALVES = 2              # column-split of the two hidden layers


def mlp_kernel(x_ref, w1_ref, b1_ref, w2_ref, b2_ref, w3_ref, b3_ref, o_ref):
    # In-kernel bf16 cast of the raw f32 input tile (VPU; avoids a wrapper pass).
    x = x_ref[...].astype(jnp.bfloat16)                       # (TM, 784)

    def hidden_layer(xb, w_ref, b_ref):
        # Column-split so the bias-add / ReLU / bf16-cast epilogue (VPU) of
        # half j can issue while the MXU runs the matmul of half j+1.
        n = w_ref.shape[1]
        h = n // HALVES
        parts = []
        for j in range(HALVES):
            lo, hi = j * h, (j + 1) * h
            acc = jnp.dot(xb, w_ref[:, lo:hi],
                          preferred_element_type=jnp.float32)  # MXU, f32 acc
            acc = jnp.maximum(acc + b_ref[:, lo:hi], 0.0)       # VPU epilogue
            parts.append(acc.astype(jnp.bfloat16))
        return jnp.concatenate(parts, axis=-1)

    h1 = hidden_layer(x, w1_ref, b1_ref)                       # (TM, 512) bf16
    h2 = hidden_layer(h1, w2_ref, b2_ref)                      # (TM, 512) bf16
    z = jnp.dot(h2, w3_ref[...], preferred_element_type=jnp.float32) + b3_ref[...]
    o_ref[...] = z.astype(o_ref.dtype)                          # (TM, 128) bf16 store


def _round_up(x, m):
    return ((x + m - 1) // m) * m


def _choose_tm(batch, requested):
    """Batch-tile selection: multiple of 16, and >=2 grid steps when possible."""
    if batch <= 16:
        # Tiny batches: one exact tile (8-row sublane minimum); MXU M-util is
        # inherently low here, nothing to win in-kernel.
        return _round_up(batch, 8)
    tm = max(16, (min(requested, 2048) // 16) * 16)   # bf16 packs 16 rows/sublane-pair
    tm = min(tm, _round_up(batch, 16))
    # v7x has 2 TensorCores: keep >=2 grid steps so the "parallel" batch axis
    # actually splits across them (no-op on single-TC v5e/v6e).
    if pl.cdiv(batch, tm) < 2:
        tm = max(16, _round_up(pl.cdiv(batch, 2), 16))
    return tm


def prepare_kernel_params(params):
    """Cast/pad natural (x @ W + b layout) params into kernel layout."""
    w1, b1, w2, b2, w3, b3 = params
    w1b = w1.astype(jnp.bfloat16)                                           # (784, 512)
    w2b = w2.astype(jnp.bfloat16)                                           # (512, 512)
    w3p = jnp.pad(w3, ((0, 0), (0, N_PAD - w3.shape[1]))).astype(jnp.bfloat16)  # (512, 128)
    b3p = jnp.pad(b3, ((0, 0), (0, N_PAD - b3.shape[1])))                   # (1, 128) f32
    return (w1b, b1, w2b, b2, w3p, b3p)


def mlp_forward(x_nchw, kparams, *, tm=512):
    """Forward pass. x_nchw: (B, 1, 28, 28) f32 (PyTorch NCHW)."""
    w1b, b1, w2b, b2, w3p, b3p = kparams
    B = x_nchw.shape[0]

    # nn.Flatten(start_dim=1): free reshape of a contiguous NCHW tensor.
    x = x_nchw.reshape(B, -1)                         # (B, 784) f32, no pad/cast

    tm = _choose_tm(B, tm)
    grid = (pl.cdiv(B, tm),)                          # partial last block OK: rows
                                                      # are independent, OOB writes dropped
    resident = lambda shape: pl.BlockSpec(shape, lambda i: (0,) * len(shape))

    out = pl.pallas_call(
        mlp_kernel,
        out_shape=jax.ShapeDtypeStruct((B, N_PAD), jnp.bfloat16),
        grid=grid,
        in_specs=[
            pl.BlockSpec((tm, IN_FEATURES), lambda i: (i, 0)),   # x: tiled over batch
            resident(w1b.shape), resident(b1.shape),             # weights/biases: VMEM-resident
            resident(w2b.shape), resident(b2.shape),
            resident(w3p.shape), resident(b3p.shape),
        ],
        out_specs=pl.BlockSpec((tm, N_PAD), lambda i: (i, 0)),
        compiler_params=pltpu.CompilerParams(
            dimension_semantics=("parallel",),                   # shard batch across TCs
            vmem_limit_bytes=(48 << 20) if tm >= 1024 else None, # v5e 16 MiB default
        ),
    )(x, w1b, b1, w2b, b2, w3p, b3p)

    return out[:, :N_CLASSES]


def init_params(key):
    # Deterministic PyTorch-style init: U(-1/sqrt(fan_in), 1/sqrt(fan_in)).
    def linear(key, fan_in, fan_out):
        kw, kb = jax.random.split(key)
        bound = 1.0 / jnp.sqrt(fan_in)
        w = jax.random.uniform(kw, (fan_in, fan_out), jnp.float32, -bound, bound)
        b = jax.random.uniform(kb, (1, fan_out), jnp.float32, -bound, bound)
        return w, b

    k1, k2, k3 = jax.random.split(key, 3)
    w1, b1 = linear(k1, IN_FEATURES, HID)
    w2, b2 = linear(k2, HID, HID)
    w3, b3 = linear(k3, HID, N_CLASSES)
    return (w1, b1, w2, b2, w3, b3)


if __name__ == "__main__":
    key = jax.random.PRNGKey(0)
    kx, kp = jax.random.split(key)

    params = init_params(kp)
    kparams = prepare_kernel_params(params)
    w1, b1, w2, b2, w3, b3 = params

    def reference(x_nchw):
        xf = x_nchw.reshape(x_nchw.shape[0], -1)
        r = jnp.maximum(xf @ w1 + b1, 0.0)
        r = jnp.maximum(r @ w2 + b2, 0.0)
        return r @ w3 + b3

    # Small smoke tests: B=8 (single exact tile) and B=40 (2-step grid with a
    # masked partial last block).  bf16 matmul operands/output -> loose tol.
    for batch in (8, 40):
        x = jax.random.normal(jax.random.fold_in(kx, batch),
                              (batch, 1, 28, 28), jnp.float32)
        out = jax.block_until_ready(mlp_forward(x, kparams))
        ref = reference(x)
        assert out.shape == (batch, N_CLASSES)
        err = float(jnp.max(jnp.abs(out.astype(jnp.float32) - ref)))
        assert jnp.allclose(out.astype(jnp.float32), ref, atol=5e-2, rtol=5e-2), (batch, err)

    print("KERNEL_OK")
</pallas_src>

<mosaic_0001>
module attributes {stable_mosaic.version = 11 : i64} {
  func.func @mlp_kernel(%arg0: i32, %arg1: memref<8x784xf32, #tpu.memory_space<vmem>>, %arg2: memref<784x512xbf16, #tpu.memory_space<vmem>>, %arg3: memref<1x512xf32, #tpu.memory_space<vmem>>, %arg4: memref<512x512xbf16, #tpu.memory_space<vmem>>, %arg5: memref<1x512xf32, #tpu.memory_space<vmem>>, %arg6: memref<512x128xbf16, #tpu.memory_space<vmem>>, %arg7: memref<1x128xf32, #tpu.memory_space<vmem>>, %arg8: memref<8x128xbf16, #tpu.memory_space<vmem>>) attributes {dimension_semantics = [#tpu.dimension_semantics<parallel>], iteration_bounds = array<i64: 1>, scalar_prefetch = 0 : i64, scratch_operands = 0 : i64, tpu.core_type = #tpu.core_type<tc>, window_params = [{transform_indices = @transform_0, window_bounds = array<i64: 8, 784>}, {pipeline_mode = #tpu.pipeline_mode<synchronous>, transform_indices = @transform_1, window_bounds = array<i64: 784, 512>}, {pipeline_mode = #tpu.pipeline_mode<synchronous>, transform_indices = @transform_2, window_bounds = array<i64: 1, 512>}, {pipeline_mode = #tpu.pipeline_mode<synchronous>, transform_indices = @transform_3, window_bounds = array<i64: 512, 512>}, {pipeline_mode = #tpu.pipeline_mode<synchronous>, transform_indices = @transform_4, window_bounds = array<i64: 1, 512>}, {pipeline_mode = #tpu.pipeline_mode<synchronous>, transform_indices = @transform_5, window_bounds = array<i64: 512, 128>}, {pipeline_mode = #tpu.pipeline_mode<synchronous>, transform_indices = @transform_6, window_bounds = array<i64: 1, 128>}, {transform_indices = @transform_7, window_bounds = array<i64: 8, 128>}]} {
    %c0 = arith.constant 0 : index
    %c0_0 = arith.constant 0 : index
    %0 = vector.load %arg1[%c0, %c0_0] : memref<8x784xf32, #tpu.memory_space<vmem>>, vector<8x784xf32>
    %1 = arith.truncf %0 : vector<8x784xf32> to vector<8x784xbf16>
    %c0_1 = arith.constant 0 : index
    %c0_2 = arith.constant 0 : index
    %2 = vector.load %arg2[%c0_1, %c0_2] : memref<784x512xbf16, #tpu.memory_space<vmem>>, vector<784x256xbf16>
    %cst = arith.constant dense<0.000000e+00> : vector<8x256xf32>
    %3 = tpu.matmul %1, %2, %cst {dimension_numbers = #tpu.dot_dimension_numbers<[1], [0], [0], [1], [0, 0, 1, 1], [], []>} : vector<8x784xbf16>, vector<784x256xbf16>, vector<8x256xf32> -> vector<8x256xf32>
    %c0_3 = arith.constant 0 : index
    %c0_4 = arith.constant 0 : index
    %4 = vector.load %arg3[%c0_3, %c0_4] : memref<1x512xf32, #tpu.memory_space<vmem>>, vector<1x256xf32>
    %5 = vector.broadcast %4 : vector<1x256xf32> to vector<8x256xf32>
    %6 = arith.addf %3, %5 : vector<8x256xf32>
    %cst_5 = arith.constant 0.000000e+00 : f32
    %7 = vector.broadcast %cst_5 : f32 to vector<8x256xf32>
    %8 = arith.maximumf %6, %7 : vector<8x256xf32>
    %9 = arith.truncf %8 : vector<8x256xf32> to vector<8x256xbf16>
    %c0_6 = arith.constant 0 : index
    %c256 = arith.constant 256 : index
    %10 = vector.load %arg2[%c0_6, %c256] : memref<784x512xbf16, #tpu.memory_space<vmem>>, vector<784x256xbf16>
    %cst_7 = arith.constant dense<0.000000e+00> : vector<8x256xf32>
    %11 = tpu.matmul %1, %10, %cst_7 {dimension_numbers = #tpu.dot_dimension_numbers<[1], [0], [0], [1], [0, 0, 1, 1], [], []>} : vector<8x784xbf16>, vector<784x256xbf16>, vector<8x256xf32> -> vector<8x256xf32>
    %c0_8 = arith.constant 0 : index
    %c256_9 = arith.constant 256 : index
    %12 = vector.load %arg3[%c0_8, %c256_9] : memref<1x512xf32, #tpu.memory_space<vmem>>, vector<1x256xf32>
    %13 = vector.broadcast %12 : vector<1x256xf32> to vector<8x256xf32>
    %14 = arith.addf %11, %13 : vector<8x256xf32>
    %cst_10 = arith.constant 0.000000e+00 : f32
    %15 = vector.broadcast %cst_10 : f32 to vector<8x256xf32>
    %16 = arith.maximumf %14, %15 : vector<8x256xf32>
    %17 = arith.truncf %16 : vector<8x256xf32> to vector<8x256xbf16>
    %18 = tpu.concatenate %9, %17 in 1 : vector<8x256xbf16>, vector<8x256xbf16> -> vector<8x512xbf16>
    %c0_11 = arith.constant 0 : index
    %c0_12 = arith.constant 0 : index
    %19 = vector.load %arg4[%c0_11, %c0_12] : memref<512x512xbf16, #tpu.memory_space<vmem>>, vector<512x256xbf16>
    %cst_13 = arith.constant dense<0.000000e+00> : vector<8x256xf32>
    %20 = tpu.matmul %18, %19, %cst_13 {dimension_numbers = #tpu.dot_dimension_numbers<[1], [0], [0], [1], [0, 0, 1, 1], [], []>} : vector<8x512xbf16>, vector<512x256xbf16>, vector<8x256xf32> -> vector<8x256xf32>
    %c0_14 = arith.constant 0 : index
    %c0_15 = arith.constant 0 : index
    %21 = vector.load %arg5[%c0_14, %c0_15] : memref<1x512xf32, #tpu.memory_space<vmem>>, vector<1x256xf32>
    %22 = vector.broadcast %21 : vector<1x256xf32> to vector<8x256xf32>
    %23 = arith.addf %20, %22 : vector<8x256xf32>
    %cst_16 = arith.constant 0.000000e+00 : f32
    %24 = vector.broadcast %cst_16 : f32 to vector<8x256xf32>
    %25 = arith.maximumf %23, %24 : vector<8x256xf32>
    %26 = arith.truncf %25 : vector<8x256xf32> to vector<8x256xbf16>
    %c0_17 = arith.constant 0 : index
    %c256_18 = arith.constant 256 : index
    %27 = vector.load %arg4[%c0_17, %c256_18] : memref<512x512xbf16, #tpu.memory_space<vmem>>, vector<512x256xbf16>
    %cst_19 = arith.constant dense<0.000000e+00> : vector<8x256xf32>
    %28 = tpu.matmul %18, %27, %cst_19 {dimension_numbers = #tpu.dot_dimension_numbers<[1], [0], [0], [1], [0, 0, 1, 1], [], []>} : vector<8x512xbf16>, vector<512x256xbf16>, vector<8x256xf32> -> vector<8x256xf32>
    %c0_20 = arith.constant 0 : index
    %c256_21 = arith.constant 256 : index
    %29 = vector.load %arg5[%c0_20, %c256_21] : memref<1x512xf32, #tpu.memory_space<vmem>>, vector<1x256xf32>
    %30 = vector.broadcast %29 : vector<1x256xf32> to vector<8x256xf32>
    %31 = arith.addf %28, %30 : vector<8x256xf32>
    %cst_22 = arith.constant 0.000000e+00 : f32
    %32 = vector.broadcast %cst_22 : f32 to vector<8x256xf32>
    %33 = arith.maximumf %31, %32 : vector<8x256xf32>
    %34 = arith.truncf %33 : vector<8x256xf32> to vector<8x256xbf16>
    %35 = tpu.concatenate %26, %34 in 1 : vector<8x256xbf16>, vector<8x256xbf16> -> vector<8x512xbf16>
    %c0_23 = arith.constant 0 : index
    %c0_24 = arith.constant 0 : index
    %36 = vector.load %arg6[%c0_23, %c0_24] : memref<512x128xbf16, #tpu.memory_space<vmem>>, vector<512x128xbf16>
    %cst_25 = arith.constant dense<0.000000e+00> : vector<8x128xf32>
    %37 = tpu.matmul %35, %36, %cst_25 {dimension_numbers = #tpu.dot_dimension_numbers<[1], [0], [0], [1], [0, 0, 1, 1], [], []>} : vector<8x512xbf16>, vector<512x128xbf16>, vector<8x128xf32> -> vector<8x128xf32>
    %c0_26 = arith.constant 0 : index
    %c0_27 = arith.constant 0 : index
    %38 = vector.load %arg7[%c0_26, %c0_27] : memref<1x128xf32, #tpu.memory_space<vmem>>, vector<1x128xf32>
    %39 = vector.broadcast %38 : vector<1x128xf32> to vector<8x128xf32>
    %40 = arith.addf %37, %39 : vector<8x128xf32>
    %41 = arith.truncf %40 : vector<8x128xf32> to vector<8x128xbf16>
    %c0_28 = arith.constant 0 : index
    %c0_29 = arith.constant 0 : index
    %42 = vector.load %arg8[%c0_28, %c0_29] : memref<8x128xbf16, #tpu.memory_space<vmem>>, vector<8x128xbf16>
    tpu.vector_store %arg8[%c0_28, %c0_29], %41 {strides = array<i32>} : memref<8x128xbf16, #tpu.memory_space<vmem>>, vector<8x128xbf16>,
    return
  }
  func.func @transform_0(%arg0: i32) -> (i32, i32) {
    %c0_i32 = arith.constant 0 : i32
    %c0_i32_0 = arith.constant 0 : i32
    return %arg0, %c0_i32 : i32, i32
  }
  func.func @transform_1(%arg0: i32) -> (i32, i32) {
    %c0_i32 = arith.constant 0 : i32
    %c0_i32_0 = arith.constant 0 : i32
    %c0_i32_1 = arith.constant 0 : i32
    return %c0_i32, %c0_i32_0 : i32, i32
  }
  func.func @transform_2(%arg0: i32) -> (i32, i32) {
    %c0_i32 = arith.constant 0 : i32
    %c0_i32_0 = arith.constant 0 : i32
    %c0_i32_1 = arith.constant 0 : i32
    return %c0_i32, %c0_i32_0 : i32, i32
  }
  func.func @transform_3(%arg0: i32) -> (i32, i32) {
    %c0_i32 = arith.constant 0 : i32
    %c0_i32_0 = arith.constant 0 : i32
    %c0_i32_1 = arith.constant 0 : i32
    return %c0_i32, %c0_i32_0 : i32, i32
  }
  func.func @transform_4(%arg0: i32) -> (i32, i32) {
    %c0_i32 = arith.constant 0 : i32
    %c0_i32_0 = arith.constant 0 : i32
    %c0_i32_1 = arith.constant 0 : i32
    return %c0_i32, %c0_i32_0 : i32, i32
  }
  func.func @transform_5(%arg0: i32) -> (i32, i32) {
    %c0_i32 = arith.constant 0 : i32
    %c0_i32_0 = arith.constant 0 : i32
    %c0_i32_1 = arith.constant 0 : i32
    return %c0_i32, %c0_i32_0 : i32, i32
  }
  func.func @transform_6(%arg0: i32) -> (i32, i32) {
    %c0_i32 = arith.constant 0 : i32
    %c0_i32_0 = arith.constant 0 : i32
    %c0_i32_1 = arith.constant 0 : i32
    return %c0_i32, %c0_i32_0 : i32, i32
  }
  func.func @transform_7(%arg0: i32) -> (i32, i32) {
    %c0_i32 = arith.constant 0 : i32
    %c0_i32_0 = arith.constant 0 : i32
    return %arg0, %c0_i32 : i32, i32
  }
}

</mosaic_0001>

<llo_original>
// kernel: tpu_custom_call.1
$region0: #{tpu_custom_call.1}
  #allocation0 [shape = 'u32[]', space=smem, size = 0x4, offset = 0x4, fixed_abs, tag = 'smem constant byte address 0x4 - core index']
  #allocation1 [shape = 'u32[144,128]{1,0:T(1,128)}', space=vmem, size = 0x12000, scoped, tag = 'internal scratch']
  %s0 = inlined_call_operand.hbm [shape: f32[8,784], index: 0, kind: input, shape index: {}]
  %s1 = inlined_call_operand.hbm [shape: bf16[784,512], index: 1, kind: input, shape index: {}]
  %s2 = inlined_call_operand.vmem [shape: f32[1,512], index: 2, kind: input, shape index: {}]
  %s3 = inlined_call_operand.hbm [shape: bf16[512,512], index: 3, kind: input, shape index: {}]
  %s4 = inlined_call_operand.vmem [shape: f32[1,512], index: 4, kind: input, shape index: {}]
  %s5 = inlined_call_operand.hbm [shape: bf16[512,128], index: 5, kind: input, shape index: {}]
  %s6 = inlined_call_operand.vmem [shape: f32[1,128], index: 6, kind: input, shape index: {}]
  %s7 = inlined_call_operand.hbm [shape: bf16[8,128], index: 7, kind: output, shape index: {}]
  %s8 = sld [smem:[#allocation0]]
  $region54: #{tpu_custom_call.1} parent=0
    _
  %s10 = ssub.s32 1, %s8
  %s11 = scalar_select 0, %s10, %s8
  $region1: #{tpu_custom_call.1} parent=0
    #allocation2 [shape = 'u8[28672]{0}', space=vmem, size = 0x7000, scoped, tag = 'input window, operand 0, single buffered']
    #allocation3 [shape = 's32[1]{0}', space=sflag, size = 0x4, scoped, tag = 'scoped memory for tpu_custom_call.1']
    #allocation4 [shape = 's32[1]{0}', space=sflag, size = 0x4, scoped, tag = 'scoped memory for tpu_custom_call.1']
    #allocation5 [shape = 'u8[802816]{0}', space=vmem, size = 0xc4000, scoped, tag = 'input window, operand 1, single buffered']
    #allocation6 [shape = 's32[1]{0}', space=sflag, size = 0x4, scoped, tag = 'scoped memory for tpu_custom_call.1']
    #allocation7 [shape = 'u8[524288]{0}', space=vmem, size = 0x80000, scoped, tag = 'input window, operand 3, single buffered']
    #allocation8 [shape = 'u8[131072]{0}', space=vmem, size = 0x20000, scoped, tag = 'input window, operand 5, single buffered']
    #allocation9 [shape = 's32[1]{0}', space=sflag, size = 0x4, scoped, tag = 'scoped memory for tpu_custom_call.1']
    #allocation10 [shape = 'u8[2048]{0}', space=vmem, size = 0x800, scoped, tag = 'output window, operand 0, single buffered']
    %12 = vsyncpa [#allocation3], 0
    %13 = vsyncpa [#allocation6], 0
    %14 = vsyncpa [#allocation9], 0
    %15 = vsyncpa [#allocation4], 0
    // Predicated region
    $region2: #{tpu_custom_call.1} parent=1 // pred_check
      _
    $region3: #{tpu_custom_call.1} parent=1 // pred_check_branch
      %17 = sbr.rel (0) target = $region5
    $region4: #{tpu_custom_call.1} parent=1 // pred_region
      %s19 = ssub.s32 896, 896
      %20 = vsyncadd [#allocation3], %s19
      %s22 = sshll.u32 [#allocation2], 4
      %s23 = int_to_ptr.vmem [resolvable:$true] %s22
      %25 = dma.hbm_to_vmem [thread:$0]  %s0, 896, %s23, [#allocation3]
    $region5: #{tpu_custom_call.1} parent=1 // pred_fallthru
      _
    // Predicated region
    $region6: #{tpu_custom_call.1} parent=1 // pred_check
      _
    $region7: #{tpu_custom_call.1} parent=1 // pred_check_branch
      %27 = sbr.rel (0) target = $region9
    $region8: #{tpu_custom_call.1} parent=1 // pred_region
      %s29 = ssub.s32 25088, 25088
      %30 = vsyncadd [#allocation6], %s29
      %s31 = sshll.u32 [#allocation5], 4
      %s32 = int_to_ptr.vmem [resolvable:$true] %s31
      %37 = dma.hbm_to_vmem [thread:$0]  %s1, 25088, %s32, [#allocation6], 256, 256, 16
    $region9: #{tpu_custom_call.1} parent=1 // pred_fallthru
      _
    // Predicated region
    $region10: #{tpu_custom_call.1} parent=1 // pred_check
      _
    $region11: #{tpu_custom_call.1} parent=1 // pred_check_branch
      %39 = sbr.rel (0) target = $region13
    $region12: #{tpu_custom_call.1} parent=1 // pred_region
      _
    $region13: #{tpu_custom_call.1} parent=1 // pred_fallthru
      _
    // Predicated region
    $region14: #{tpu_custom_call.1} parent=1 // pred_check
      _
    $region15: #{tpu_custom_call.1} parent=1 // pred_check_branch
      %41 = sbr.rel (0) target = $region17
    $region16: #{tpu_custom_call.1} parent=1 // pred_region
      %s43 = ssub.s32 16384, 16384
      %44 = vsyncadd [#allocation6], %s43
      %s45 = sshll.u32 [#allocation7], 4
      %s46 = int_to_ptr.vmem [resolvable:$true] %s45
      %51 = dma.hbm_to_vmem [thread:$0]  %s3, 16384, %s46, [#allocation6], 256, 256, 16
    $region17: #{tpu_custom_call.1} parent=1 // pred_fallthru
      _
    // Predicated region
    $region18: #{tpu_custom_call.1} parent=1 // pred_check
      _
    $region19: #{tpu_custom_call.1} parent=1 // pred_check_branch
      %53 = sbr.rel (0) target = $region21
    $region20: #{tpu_custom_call.1} parent=1 // pred_region
      _
    $region21: #{tpu_custom_call.1} parent=1 // pred_fallthru
      _
    // Predicated region
    $region22: #{tpu_custom_call.1} parent=1 // pred_check
      _
    $region23: #{tpu_custom_call.1} parent=1 // pred_check_branch
      %55 = sbr.rel (0) target = $region25
    $region24: #{tpu_custom_call.1} parent=1 // pred_region
      %s57 = ssub.s32 4096, 4096
      %58 = vsyncadd [#allocation9], %s57
      %s59 = sshll.u32 [#allocation8], 4
      %s60 = int_to_ptr.vmem [resolvable:$true] %s59
      %65 = dma.hbm_to_vmem [thread:$0]  %s5, 4096, %s60, [#allocation9], 64, 64, 4
    $region25: #{tpu_custom_call.1} parent=1 // pred_fallthru
      _
    // Predicated region
    $region26: #{tpu_custom_call.1} parent=1 // pred_check
      _
    $region27: #{tpu_custom_call.1} parent=1 // pred_check_branch
      %67 = sbr.rel (0) target = $region29
    $region28: #{tpu_custom_call.1} parent=1 // pred_region
      _
    $region29: #{tpu_custom_call.1} parent=1 // pred_fallthru
      _
    // Predicated region
    $region30: #{tpu_custom_call.1} parent=1 // pred_check
      _
    $region31: #{tpu_custom_call.1} parent=1 // pred_check_branch
      %69 = sbr.rel (0) target = $region33
    $region32: #{tpu_custom_call.1} parent=1 // pred_region
      %70 = dma.done [#allocation3], 896
    $region33: #{tpu_custom_call.1} parent=1 // pred_fallthru
      _
    // Predicated region
    $region34: #{tpu_custom_call.1} parent=1 // pred_check
      _
    $region35: #{tpu_custom_call.1} parent=1 // pred_check_branch
      %72 = sbr.rel (0) target = $region37
    $region36: #{tpu_custom_call.1} parent=1 // pred_region
      %73 = dma.done [#allocation6], 25088
    $region37: #{tpu_custom_call.1} parent=1 // pred_fallthru
      _
    // Predicated region
    $region38: #{tpu_custom_call.1} parent=1 // pred_check
      _
    $region39: #{tpu_custom_call.1} parent=1 // pred_check_branch
      %75 = sbr.rel (0) target = $region41
    $region40: #{tpu_custom_call.1} parent=1 // pred_region
      %76 = dma.done [#allocation6], 16384
    $region41: #{tpu_custom_call.1} parent=1 // pred_fallthru
      _
    // Predicated region
    $region42: #{tpu_custom_call.1} parent=1 // pred_check
      _
    $region43: #{tpu_custom_call.1} parent=1 // pred_check_branch
      %78 = sbr.rel (0) target = $region45
    $region44: #{tpu_custom_call.1} parent=1 // pred_region
      %79 = dma.done [#allocation9], 4096
    $region45: #{tpu_custom_call.1} parent=1 // pred_fallthru
      _
    %v81 = vld [vmem:[#allocation2] sm:$0xff]
    %v82 = vld [vmem:[#allocation2 + $0x8] sm:$0xff]
    %v83 = vld [vmem:[#allocation2 + $0x10] sm:$0xff]
    %v84 = vld [vmem:[#allocation2 + $0x18] sm:$0xff]
    %v85 = vld [vmem:[#allocation2 + $0x20] sm:$0xff]
    %v86 = vld [vmem:[#allocation2 + $0x28] sm:$0xff]
    %v87 = vld [vmem:[#allocation2 + $0x30] sm:$0xff]
    %v88 = vpack.c.bf16 %v81, %v81
    %v89 = vpack.c.bf16 %v82, %v82
    %v90 = vpack.c.bf16 %v83, %v83
    %v91 = vpack.c.bf16 %v84, %v84
    %v92 = vpack.c.bf16 %v85, %v85
    %v93 = vpack.c.bf16 %v86, %v86
    %v94 = vpack.c.bf16 %v87, %v87
    %v95 = vld [vmem:[#allocation5] sm:$0xff]
    %v96 = vld [vmem:[#allocation5 + $0x10] sm:$0xff]
    %v97 = vld [vmem:[#allocation5 + $0x20] sm:$0xff]
    %v98 = vld [vmem:[#allocation5 + $0x30] sm:$0xff]
    %v99 = vld [vmem:[#allocation5 + $0x40] sm:$0xff]
    %v100 = vld [vmem:[#allocation5 + $0x50] sm:$0xff]
    %v101 = vld [vmem:[#allocation5 + $0x60] sm:$0xff]
    %v102 = vld [vmem:[#allocation5 + $0x70] sm:$0xff]
    %v103 = vld [vmem:[#allocation5 + $0x80] sm:$0xff]
    %v104 = vld [vmem:[#allocation5 + $0x90] sm:$0xff]
    %v105 = vld [vmem:[#allocation5 + $0xa0] sm:$0xff]
    %v106 = vld [vmem:[#allocation5 + $0xb0] sm:$0xff]
    %v107 = vld [vmem:[#allocation5 + $0xc0] sm:$0xff]
    %v108 = vld [vmem:[#allocation5 + $0xd0] sm:$0xff]
    %v109 = vld [vmem:[#allocation5 + $0xe0] sm:$0xff]
    %v110 = vld [vmem:[#allocation5 + $0xf0] sm:$0xff]
    %v111 = vld [vmem:[#allocation5 + $0x100] sm:$0xff]
    %v112 = vld [vmem:[#allocation5 + $0x110] sm:$0xff]
    %v113 = vld [vmem:[#allocation5 + $0x120] sm:$0xff]
    %v114 = vld [vmem:[#allocation5 + $0x130] sm:$0xff]
    %v115 = vld [vmem:[#allocation5 + $0x140] sm:$0xff]
    %v116 = vld [vmem:[#allocation5 + $0x150] sm:$0xff]
    %v117 = vld [vmem:[#allocation5 + $0x160] sm:$0xff]
    %v118 = vld [vmem:[#allocation5 + $0x170] sm:$0xff]
    %v119 = vld [vmem:[#allocation5 + $0x180] sm:$0xff]
    %v120 = vld [vmem:[#allocation5 + $0x190] sm:$0xff]
    %v121 = vld [vmem:[#allocation5 + $0x1a0] sm:$0xff]
    %v122 = vld [vmem:[#allocation5 + $0x1b0] sm:$0xff]
    %v123 = vld [vmem:[#allocation5 + $0x1c0] sm:$0xff]
    %v124 = vld [vmem:[#allocation5 + $0x1d0] sm:$0xff]
    %v125 = vld [vmem:[#allocation5 + $0x1e0] sm:$0xff]
    %v126 = vld [vmem:[#allocation5 + $0x1f0] sm:$0xff]
    %v127 = vld [vmem:[#allocation5 + $0x200] sm:$0xff]
    %v128 = vld [vmem:[#allocation5 + $0x210] sm:$0xff]
    %v129 = vld [vmem:[#allocation5 + $0x220] sm:$0xff]
    %v130 = vld [vmem:[#allocation5 + $0x230] sm:$0xff]
    %v131 = vld [vmem:[#allocation5 + $0x240] sm:$0xff]
    %v132 = vld [vmem:[#allocation5 + $0x250] sm:$0xff]
    %v133 = vld [vmem:[#allocation5 + $0x260] sm:$0xff]
    %v134 = vld [vmem:[#allocation5 + $0x270] sm:$0xff]
    %v135 = vld [vmem:[#allocation5 + $0x280] sm:$0xff]
    %v136 = vld [vmem:[#allocation5 + $0x290] sm:$0xff]
    %v137 = vld [vmem:[#allocation5 + $0x2a0] sm:$0xff]
    %v138 = vld [vmem:[#allocation5 + $0x2b0] sm:$0xff]
    %v139 = vld [vmem:[#allocation5 + $0x2c0] sm:$0xff]
    %v140 = vld [vmem:[#allocation5 + $0x2d0] sm:$0xff]
    %v141 = vld [vmem:[#allocation5 + $0x2e0] sm:$0xff]
    %v142 = vld [vmem:[#allocation5 + $0x2f0] sm:$0xff]
    %v143 = vld [vmem:[#allocation5 + $0x300] sm:$0xff]
    %v144 = vld [vmem:[#allocation5 + $0x310] sm:$0xff]
    %v145 = vld [vmem:[#allocation5 + $0x320] sm:$0xff]
    %v146 = vld [vmem:[#allocation5 + $0x330] sm:$0xff]
    %v147 = vld [vmem:[#allocation5 + $0x340] sm:$0xff]
    %v148 = vld [vmem:[#allocation5 + $0x350] sm:$0xff]
    %v149 = vld [vmem:[#allocation5 + $0x360] sm:$0xff]
    %v150 = vld [vmem:[#allocation5 + $0x370] sm:$0xff]
    %v151 = vld [vmem:[#allocation5 + $0x380] sm:$0xff]
    %v152 = vld [vmem:[#allocation5 + $0x390] sm:$0xff]
    %v153 = vld [vmem:[#allocation5 + $0x3a0] sm:$0xff]
    %v154 = vld [vmem:[#allocation5 + $0x3b0] sm:$0xff]
    %v155 = vld [vmem:[#allocation5 + $0x3c0] sm:$0xff]
    %v156 = vld [vmem:[#allocation5 + $0x3d0] sm:$0xff]
    %v157 = vld [vmem:[#allocation5 + $0x3e0] sm:$0xff]
    %v158 = vld [vmem:[#allocation5 + $0x3f0] sm:$0xff]
    %v159 = vld [vmem:[#allocation5 + $0x400] sm:$0xff]
    %v160 = vld [vmem:[#allocation5 + $0x410] sm:$0xff]
    %v161 = vld [vmem:[#allocation5 + $0x420] sm:$0xff]
    %v162 = vld [vmem:[#allocation5 + $0x430] sm:$0xff]
    %v163 = vld [vmem:[#allocation5 + $0x440] sm:$0xff]
    %v164 = vld [vmem:[#allocation5 + $0x450] sm:$0xff]
    %v165 = vld [vmem:[#allocation5 + $0x460] sm:$0xff]
    %v166 = vld [vmem:[#allocation5 + $0x470] sm:$0xff]
    %v167 = vld [vmem:[#allocation5 + $0x480] sm:$0xff]
    %v168 = vld [vmem:[#allocation5 + $0x490] sm:$0xff]
    %v169 = vld [vmem:[#allocation5 + $0x4a0] sm:$0xff]
    %v170 = vld [vmem:[#allocation5 + $0x4b0] sm:$0xff]
    %v171 = vld [vmem:[#allocation5 + $0x4c0] sm:$0xff]
    %v172 = vld [vmem:[#allocation5 + $0x4d0] sm:$0xff]
    %v173 = vld [vmem:[#allocation5 + $0x4e0] sm:$0xff]
    %v174 = vld [vmem:[#allocation5 + $0x4f0] sm:$0xff]
    %v175 = vld [vmem:[#allocation5 + $0x500] sm:$0xff]
    %v176 = vld [vmem:[#allocation5 + $0x510] sm:$0xff]
    %v177 = vld [vmem:[#allocation5 + $0x520] sm:$0xff]
    %v178 = vld [vmem:[#allocation5 + $0x530] sm:$0xff]
    %v179 = vld [vmem:[#allocation5 + $0x540] sm:$0xff]
    %v180 = vld [vmem:[#allocation5 + $0x550] sm:$0xff]
    %v181 = vld [vmem:[#allocation5 + $0x560] sm:$0xff]
    %v182 = vld [vmem:[#allocation5 + $0x570] sm:$0xff]
    %v183 = vld [vmem:[#allocation5 + $0x580] sm:$0xff]
    %v184 = vld [vmem:[#allocation5 + $0x590] sm:$0xff]
    %v185 = vld [vmem:[#allocation5 + $0x5a0] sm:$0xff]
    %v186 = vld [vmem:[#allocation5 + $0x5b0] sm:$0xff]
    %v187 = vld [vmem:[#allocation5 + $0x5c0] sm:$0xff]
    %v188 = vld [vmem:[#allocation5 + $0x5d0] sm:$0xff]
    %v189 = vld [vmem:[#allocation5 + $0x5e0] sm:$0xff]
    %v190 = vld [vmem:[#allocation5 + $0x5f0] sm:$0xff]
    %v191 = vld [vmem:[#allocation5 + $0x600] sm:$0xff]
    %v192 = vld [vmem:[#allocation5 + $0x610] sm:$0xff]
    %v193 = vld [vmem:[%s2] sm:$0x3]
    %v195 = vlaneseq
    %v196 = vshrl.u32 %v195, 7
    %v197 = vsub.s32 0, %v196
    %v198 = vrot.slane %v193, %v197
    %v199 = vlaneseq
    %v200 = vshrl.u32 %v199, 7
    %v201 = vsub.s32 1, %v200
    %v202 = vrot.slane %v193, %v201
    %v303 = vunpack.c.l.b16 %v95
    %v304 = vunpack.c.h.b16 %v95
    %v305 = vunpack.c.l.b16 %v96
    %v306 = vunpack.c.h.b16 %v96
    %v307 = vunpack.c.l.b16 %v97
    %v308 = vunpack.c.h.b16 %v97
    %v309 = vunpack.c.l.b16 %v98
    %v310 = vunpack.c.h.b16 %v98
    %v311 = vunpack.c.l.b16 %v99
    %v312 = vunpack.c.h.b16 %v99
    %v313 = vunpack.c.l.b16 %v100
    %v314 = vunpack.c.h.b16 %v100
    %v315 = vunpack.c.l.b16 %v101
    %v316 = vunpack.c.h.b16 %v101
    %v317 = vunpack.c.l.b16 %v102
    %v318 = vunpack.c.h.b16 %v102
    %v319 = vunpack.c.l.b16 %v103
    %v320 = vunpack.c.h.b16 %v103
    %v321 = vunpack.c.l.b16 %v104
    %v322 = vunpack.c.h.b16 %v104
    %v323 = vunpack.c.l.b16 %v105
    %v324 = vunpack.c.h.b16 %v105
    %v325 = vunpack.c.l.b16 %v106
    %v326 = vunpack.c.h.b16 %v106
    %v327 = vunpack.c.l.b16 %v107
    %v328 = vunpack.c.h.b16 %v107
    %v329 = vunpack.c.l.b16 %v108
    %v330 = vunpack.c.h.b16 %v108
    %v331 = vunpack.c.l.b16 %v109
    %v332 = vunpack.c.h.b16 %v109
    %v333 = vunpack.c.l.b16 %v110
    %v334 = vunpack.c.h.b16 %v110
    %v335 = vunpack.c.l.b16 %v111
    %v336 = vunpack.c.h.b16 %v111
    %v337 = vunpack.c.l.b16 %v112
    %v338 = vunpack.c.h.b16 %v112
    %v339 = vunpack.c.l.b16 %v113
    %v340 = vunpack.c.h.b16 %v113
    %v341 = vunpack.c.l.b16 %v114
    %v342 = vunpack.c.h.b16 %v114
    %v343 = vunpack.c.l.b16 %v115
    %v344 = vunpack.c.h.b16 %v115
    %v345 = vunpack.c.l.b16 %v116
    %v346 = vunpack.c.h.b16 %v116
    %v347 = vunpack.c.l.b16 %v117
    %v348 = vunpack.c.h.b16 %v117
    %v349 = vunpack.c.l.b16 %v118
    %v350 = vunpack.c.h.b16 %v118
    %v351 = vunpack.c.l.b16 %v119
    %v352 = vunpack.c.h.b16 %v119
    %v353 = vunpack.c.l.b16 %v120
    %v354 = vunpack.c.h.b16 %v120
    %v355 = vunpack.c.l.b16 %v121
    %v356 = vunpack.c.h.b16 %v121
    %v357 = vunpack.c.l.b16 %v122
    %v358 = vunpack.c.h.b16 %v122
    %v359 = vunpack.c.l.b16 %v123
    %v360 = vunpack.c.h.b16 %v123
    %v361 = vunpack.c.l.b16 %v124
    %v362 = vunpack.c.h.b16 %v124
    %v363 = vunpack.c.l.b16 %v125
    %v364 = vunpack.c.h.b16 %v125
    %v365 = vunpack.c.l.b16 %v126
    %v366 = vunpack.c.h.b16 %v126
    %v367 = vunpack.c.l.b16 %v127
    %v368 = vunpack.c.h.b16 %v127
    %v369 = vunpack.c.l.b16 %v128
    %v370 = vunpack.c.h.b16 %v128
    %v371 = vunpack.c.l.b16 %v129
    %v372 = vunpack.c.h.b16 %v129
    %v373 = vunpack.c.l.b16 %v130
    %v374 = vunpack.c.h.b16 %v130
    %v375 = vunpack.c.l.b16 %v131
    %v376 = vunpack.c.h.b16 %v131
    %v377 = vunpack.c.l.b16 %v132
    %v378 = vunpack.c.h.b16 %v132
    %v379 = vunpack.c.l.b16 %v133
    %v380 = vunpack.c.h.b16 %v133
    %v381 = vunpack.c.l.b16 %v134
    %v382 = vunpack.c.h.b16 %v134
    %v383 = vunpack.c.l.b16 %v135
    %v384 = vunpack.c.h.b16 %v135
    %v385 = vunpack.c.l.b16 %v136
    %v386 = vunpack.c.h.b16 %v136
    %v387 = vunpack.c.l.b16 %v137
    %v388 = vunpack.c.h.b16 %v137
    %v389 = vunpack.c.l.b16 %v138
    %v390 = vunpack.c.h.b16 %v138
    %v391 = vunpack.c.l.b16 %v139
    %v392 = vunpack.c.h.b16 %v139
    %v393 = vunpack.c.l.b16 %v140
    %v394 = vunpack.c.h.b16 %v140
    %v395 = vunpack.c.l.b16 %v141
    %v396 = vunpack.c.h.b16 %v141
    %v397 = vunpack.c.l.b16 %v142
    %v398 = vunpack.c.h.b16 %v142
    %v399 = vunpack.c.l.b16 %v143
    %v400 = vunpack.c.h.b16 %v143
    %v401 = vunpack.c.l.b16 %v144
    %v402 = vunpack.c.h.b16 %v144
    %v403 = vunpack.c.l.b16 %v145
    %v404 = vunpack.c.h.b16 %v145
    %v405 = vunpack.c.l.b16 %v146
    %v406 = vunpack.c.h.b16 %v146
    %v407 = vunpack.c.l.b16 %v147
    %v408 = vunpack.c.h.b16 %v147
    %v409 = vunpack.c.l.b16 %v148
    %v410 = vunpack.c.h.b16 %v148
    %v411 = vunpack.c.l.b16 %v149
    %v412 = vunpack.c.h.b16 %v149
    %v413 = vunpack.c.l.b16 %v150
    %v414 = vunpack.c.h.b16 %v150
    %v415 = vunpack.c.l.b16 %v151
    %v416 = vunpack.c.h.b16 %v151
    %v417 = vunpack.c.l.b16 %v152
    %v418 = vunpack.c.h.b16 %v152
    %v419 = vunpack.c.l.b16 %v153
    %v420 = vunpack.c.h.b16 %v153
    %v421 = vunpack.c.l.b16 %v154
    %v422 = vunpack.c.h.b16 %v154
    %v423 = vunpack.c.l.b16 %v155
    %v424 = vunpack.c.h.b16 %v155
    %v425 = vunpack.c.l.b16 %v156
    %v426 = vunpack.c.h.b16 %v156
    %v427 = vunpack.c.l.b16 %v157
    %v428 = vunpack.c.h.b16 %v157
    %v429 = vunpack.c.l.b16 %v158
    %v430 = vunpack.c.h.b16 %v158
    %v431 = vunpack.c.l.b16 %v159
    %v432 = vunpack.c.h.b16 %v159
    %v433 = vunpack.c.l.b16 %v160
    %v434 = vunpack.c.h.b16 %v160
    %v435 = vunpack.c.l.b16 %v161
    %v436 = vunpack.c.h.b16 %v161
    %v437 = vunpack.c.l.b16 %v162
    %v438 = vunpack.c.h.b16 %v162
    %v439 = vunpack.c.l.b16 %v163
    %v440 = vunpack.c.h.b16 %v163
    %v441 = vunpack.c.l.b16 %v164
    %v442 = vunpack.c.h.b16 %v164
    %v443 = vunpack.c.l.b16 %v165
    %v444 = vunpack.c.h.b16 %v165
    %v445 = vunpack.c.l.b16 %v166
    %v446 = vunpack.c.h.b16 %v166
    %v447 = vunpack.c.l.b16 %v167
    %v448 = vunpack.c.h.b16 %v167
    %v449 = vunpack.c.l.b16 %v168
    %v450 = vunpack.c.h.b16 %v168
    %v451 = vunpack.c.l.b16 %v169
    %v452 = vunpack.c.h.b16 %v169
    %v453 = vunpack.c.l.b16 %v170
    %v454 = vunpack.c.h.b16 %v170
    %v455 = vunpack.c.l.b16 %v171
    %v456 = vunpack.c.h.b16 %v171
    %v457 = vunpack.c.l.b16 %v172
    %v458 = vunpack.c.h.b16 %v172
    %v459 = vunpack.c.l.b16 %v173
    %v460 = vunpack.c.h.b16 %v173
    %v461 = vunpack.c.l.b16 %v174
    %v462 = vunpack.c.h.b16 %v174
    %v463 = vunpack.c.l.b16 %v175
    %v464 = vunpack.c.h.b16 %v175
    %v465 = vunpack.c.l.b16 %v176
    %v466 = vunpack.c.h.b16 %v176
    %v467 = vunpack.c.l.b16 %v177
    %v468 = vunpack.c.h.b16 %v177
    %v469 = vunpack.c.l.b16 %v178
    %v470 = vunpack.c.h.b16 %v178
    %v471 = vunpack.c.l.b16 %v179
    %v472 = vunpack.c.h.b16 %v179
    %v473 = vunpack.c.l.b16 %v180
    %v474 = vunpack.c.h.b16 %v180
    %v475 = vunpack.c.l.b16 %v181
    %v476 = vunpack.c.h.b16 %v181
    %v477 = vunpack.c.l.b16 %v182
    %v478 = vunpack.c.h.b16 %v182
    %v479 = vunpack.c.l.b16 %v183
    %v480 = vunpack.c.h.b16 %v183
    %v481 = vunpack.c.l.b16 %v184
    %v482 = vunpack.c.h.b16 %v184
    %v483 = vunpack.c.l.b16 %v185
    %v484 = vunpack.c.h.b16 %v185
    %v485 = vunpack.c.l.b16 %v186
    %v486 = vunpack.c.h.b16 %v186
    %v487 = vunpack.c.l.b16 %v187
    %v488 = vunpack.c.h.b16 %v187
    %v489 = vunpack.c.l.b16 %v188
    %v490 = vunpack.c.h.b16 %v188
    %v491 = vunpack.c.l.b16 %v189
    %v492 = vunpack.c.h.b16 %v189
    %v493 = vunpack.c.l.b16 %v190
    %v494 = vunpack.c.h.b16 %v190
    %v495 = vunpack.c.l.b16 %v191
    %v496 = vunpack.c.h.b16 %v191
    %v497 = vunpack.c.l.b16 %v192
    %v498 = vunpack.c.h.b16 %v192
    %v499 = vpack.c.b16 %v305, %v303
    %v500 = vpack.c.b16 %v306, %v304
    %v501 = vpack.c.b16 %v309, %v307
    %v502 = vpack.c.b16 %v310, %v308
    %v503 = vpack.c.b16 %v313, %v311
    %v504 = vpack.c.b16 %v314, %v312
    %v505 = vpack.c.b16 %v317, %v315
    %v506 = vpack.c.b16 %v318, %v316
    %v507 = vpack.c.b16 %v321, %v319
    %v508 = vpack.c.b16 %v322, %v320
    %v509 = vpack.c.b16 %v325, %v323
    %v510 = vpack.c.b16 %v326, %v324
    %v511 = vpack.c.b16 %v329, %v327
    %v512 = vpack.c.b16 %v330, %v328
    %v513 = vpack.c.b16 %v333, %v331
    %v514 = vpack.c.b16 %v334, %v332
    %v515 = vpack.c.b16 %v337, %v335
    %v516 = vpack.c.b16 %v338, %v336
    %v517 = vpack.c.b16 %v341, %v339
    %v518 = vpack.c.b16 %v342, %v340
    %v519 = vpack.c.b16 %v345, %v343
    %v520 = vpack.c.b16 %v346, %v344
    %v521 = vpack.c.b16 %v349, %v347
    %v522 = vpack.c.b16 %v350, %v348
    %v523 = vpack.c.b16 %v353, %v351
    %v524 = vpack.c.b16 %v354, %v352
    %v525 = vpack.c.b16 %v357, %v355
    %v526 = vpack.c.b16 %v358, %v356
    %v527 = vpack.c.b16 %v361, %v359
    %v528 = vpack.c.b16 %v362, %v360
    %v529 = vpack.c.b16 %v365, %v363
    %v530 = vpack.c.b16 %v366, %v364
    %v531 = vpack.c.b16 %v369, %v367
    %v532 = vpack.c.b16 %v370, %v368
    %v533 = vpack.c.b16 %v373, %v371
    %v534 = vpack.c.b16 %v374, %v372
    %v535 = vpack.c.b16 %v377, %v375
    %v536 = vpack.c.b16 %v378, %v376
    %v537 = vpack.c.b16 %v381, %v379
    %v538 = vpack.c.b16 %v382, %v380
    %v539 = vpack.c.b16 %v385, %v383
    %v540 = vpack.c.b16 %v386, %v384
    %v541 = vpack.c.b16 %v389, %v387
    %v542 = vpack.c.b16 %v390, %v388
    %v543 = vpack.c.b16 %v393, %v391
    %v544 = vpack.c.b16 %v394, %v392
    %v545 = vpack.c.b16 %v397, %v395
    %v546 = vpack.c.b16 %v398, %v396
    %v547 = vpack.c.b16 %v401, %v399
    %v548 = vpack.c.b16 %v402, %v400
    %v549 = vpack.c.b16 %v405, %v403
    %v550 = vpack.c.b16 %v406, %v404
    %v551 = vpack.c.b16 %v409, %v407
    %v552 = vpack.c.b16 %v410, %v408
    %v553 = vpack.c.b16 %v413, %v411
    %v554 = vpack.c.b16 %v414, %v412
    %v555 = vpack.c.b16 %v417, %v415
    %v556 = vpack.c.b16 %v418, %v416
    %v557 = vpack.c.b16 %v421, %v419
    %v558 = vpack.c.b16 %v422, %v420
    %v559 = vpack.c.b16 %v425, %v423
    %v560 = vpack.c.b16 %v426, %v424
    %v561 = vpack.c.b16 %v429, %v427
    %v562 = vpack.c.b16 %v430, %v428
    %v563 = vpack.c.b16 %v433, %v431
    %v564 = vpack.c.b16 %v434, %v432
    %v565 = vpack.c.b16 %v437, %v435
    %v566 = vpack.c.b16 %v438, %v436
    %v567 = vpack.c.b16 %v441, %v439
    %v568 = vpack.c.b16 %v442, %v440
    %v569 = vpack.c.b16 %v445, %v443
    %v570 = vpack.c.b16 %v446, %v444
    %v571 = vpack.c.b16 %v449, %v447
    %v572 = vpack.c.b16 %v450, %v448
    %v573 = vpack.c.b16 %v453, %v451
    %v574 = vpack.c.b16 %v454, %v452
    %v575 = vpack.c.b16 %v457, %v455
    %v576 = vpack.c.b16 %v458, %v456
    %v577 = vpack.c.b16 %v461, %v459
    %v578 = vpack.c.b16 %v462, %v460
    %v579 = vpack.c.b16 %v465, %v463
    %v580 = vpack.c.b16 %v466, %v464
    %v581 = vpack.c.b16 %v469, %v467
    %v582 = vpack.c.b16 %v470, %v468
    %v583 = vpack.c.b16 %v473, %v471
    %v584 = vpack.c.b16 %v474, %v472
    %v585 = vpack.c.b16 %v477, %v475
    %v586 = vpack.c.b16 %v478, %v476
    %v587 = vpack.c.b16 %v481, %v479
    %v588 = vpack.c.b16 %v482, %v480
    %v589 = vpack.c.b16 %v485, %v483
    %v590 = vpack.c.b16 %v486, %v484
    %v591 = vpack.c.b16 %v489, %v487
    %v592 = vpack.c.b16 %v490, %v488
    %v593 = vpack.c.b16 %v493, %v491
    %v594 = vpack.c.b16 %v494, %v492
    %v595 = vpack.c.b16 %v497, %v495
    %v596 = vpack.c.b16 %v498, %v496
    %vm695 = vcmask 130048
    %v697 = vsel %vm695, %v94, 0
    %699 = vmatprep.subr.bf16.mxu0 %v500
    %700 = vmatpush1.bf16.msra.mxu0 %v499
    %701 = vmatprep.subr.bf16.mxu0 %v502
    %702 = vmatpush1.bf16.msra.mxu0 %v501
    %703 = vmatprep.subr.bf16.mxu0 %v504
    %704 = vmatpush1.bf16.msra.mxu0 %v503
    %705 = vmatprep.subr.bf16.mxu0 %v506
    %706 = vmatpush1.bf16.msra.mxu0 %v505
    %707 = vmatprep.subr.bf16.mxu0 %v508
    %708 = vmatpush1.bf16.msra.mxu0 %v507
    %709 = vmatprep.subr.bf16.mxu0 %v510
    %710 = vmatpush1.bf16.msra.mxu0 %v509
    %711 = vmatprep.subr.bf16.mxu0 %v512
    %712 = vmatpush1.bf16.msra.mxu0 %v511
    %713 = vmatprep.subr.bf16.mxu0 %v514
    %714 = vmatpush1.bf16.msra.mxu0 %v513
    %715 = vmatprep.subr.bf16.mxu0 %v516
    %716 = vmatpush1.bf16.msra.mxu0 %v515
    %717 = vmatprep.subr.bf16.mxu0 %v518
    %718 = vmatpush1.bf16.msra.mxu0 %v517
    %719 = vmatprep.subr.bf16.mxu0 %v520
    %720 = vmatpush1.bf16.msra.mxu0 %v519
    %721 = vmatprep.subr.bf16.mxu0 %v522
    %722 = vmatpush1.bf16.msra.mxu0 %v521
    %723 = vmatprep.subr.bf16.mxu0 %v524
    %724 = vmatpush1.bf16.msra.mxu0 %v523
    %725 = vmatprep.subr.bf16.mxu0 %v526
    %726 = vmatpush1.bf16.msra.mxu0 %v525
    %727 = vmatprep.subr.bf16.mxu0 %v528
    %728 = vmatpush1.bf16.msra.mxu0 %v527
    %729 = vmatprep.subr.bf16.mxu0 %v530
    %730 = vmatpush1.bf16.msra.mxu0 %v529
    %731 = vmatprep.mubr.bf16.mxu0 %v89
    %732 = vmatmul.mubr.bf16.gmra.mrb[0].mxu0 %v88
    %v733 = vpop.f32.mrb[0].mxu0
    %v734 = vadd.f32 %v198, %v733
    %v735 = vpop.f32.mrb[0].mxu0
    %v736 = vadd.f32 %v202, %v735
    %v737 = vpop.f32.mrb[0].mxu0
    %v738 = vpop.f32.mrb[0].mxu0
    %739 = vdwg.mxu0
    %740 = vmatprep.subr.bf16.mxu0 %v532
    %741 = vmatpush1.bf16.msra.mxu0 %v531
    %742 = vmatprep.subr.bf16.mxu0 %v534
    %743 = vmatpush1.bf16.msra.mxu0 %v533
    %744 = vmatprep.subr.bf16.mxu0 %v536
    %745 = vmatpush1.bf16.msra.mxu0 %v535
    %746 = vmatprep.subr.bf16.mxu0 %v538
    %747 = vmatpush1.bf16.msra.mxu0 %v537
    %748 = vmatprep.subr.bf16.mxu0 %v540
    %749 = vmatpush1.bf16.msra.mxu0 %v539
    %750 = vmatprep.subr.bf16.mxu0 %v542
    %751 = vmatpush1.bf16.msra.mxu0 %v541
    %752 = vmatprep.subr.bf16.mxu0 %v544
    %753 = vmatpush1.bf16.msra.mxu0 %v543
    %754 = vmatprep.subr.bf16.mxu0 %v546
    %755 = vmatpush1.bf16.msra.mxu0 %v545
    %756 = vmatprep.subr.bf16.mxu0 %v548
    %757 = vmatpush1.bf16.msra.mxu0 %v547
    %758 = vmatprep.subr.bf16.mxu0 %v550
    %759 = vmatpush1.bf16.msra.mxu0 %v549
    %760 = vmatprep.subr.bf16.mxu0 %v552
    %761 = vmatpush1.bf16.msra.mxu0 %v551
    %762 = vmatprep.subr.bf16.mxu0 %v554
    %763 = vmatpush1.bf16.msra.mxu0 %v553
    %764 = vmatprep.subr.bf16.mxu0 %v556
    %765 = vmatpush1.bf16.msra.mxu0 %v555
    %766 = vmatprep.subr.bf16.mxu0 %v558
    %767 = vmatpush1.bf16.msra.mxu0 %v557
    %768 = vmatprep.subr.bf16.mxu0 %v560
    %769 = vmatpush1.bf16.msra.mxu0 %v559
    %770 = vmatprep.subr.bf16.mxu0 %v562
    %771 = vmatpush1.bf16.msra.mxu0 %v561
    %772 = vmatprep.mubr.bf16.mxu0 %v91
    %773 = vmatmul.mubr.bf16.gmra.mrb[0].mxu0 %v90
    %v774 = vpop.f32.mrb[0].mxu0
    %v775 = vadd.f32 %v734, %v774
    %v776 = vpop.f32.mrb[0].mxu0
    %v777 = vadd.f32 %v736, %v776
    %v778 = vpop.f32.mrb[0].mxu0
    %v779 = vpop.f32.mrb[0].mxu0
    %780 = vdwg.mxu0
    %781 = vmatprep.subr.bf16.mxu0 %v564
    %782 = vmatpush1.bf16.msra.mxu0 %v563
    %783 = vmatprep.subr.bf16.mxu0 %v566
    %784 = vmatpush1.bf16.msra.mxu0 %v565
    %785 = vmatprep.subr.bf16.mxu0 %v568
    %786 = vmatpush1.bf16.msra.mxu0 %v567
    %787 = vmatprep.subr.bf16.mxu0 %v570
    %788 = vmatpush1.bf16.msra.mxu0 %v569
    %789 = vmatprep.subr.bf16.mxu0 %v572
    %790 = vmatpush1.bf16.msra.mxu0 %v571
    %791 = vmatprep.subr.bf16.mxu0 %v574
    %792 = vmatpush1.bf16.msra.mxu0 %v573
    %793 = vmatprep.subr.bf16.mxu0 %v576
    %794 = vmatpush1.bf16.msra.mxu0 %v575
    %795 = vmatprep.subr.bf16.mxu0 %v578
    %796 = vmatpush1.bf16.msra.mxu0 %v577
    %797 = vmatprep.subr.bf16.mxu0 %v580
    %798 = vmatpush1.bf16.msra.mxu0 %v579
    %799 = vmatprep.subr.bf16.mxu0 %v582
    %800 = vmatpush1.bf16.msra.mxu0 %v581
    %801 = vmatprep.subr.bf16.mxu0 %v584
    %802 = vmatpush1.bf16.msra.mxu0 %v583
    %803 = vmatprep.subr.bf16.mxu0 %v586
    %804 = vmatpush1.bf16.msra.mxu0 %v585
    %805 = vmatprep.subr.bf16.mxu0 %v588
    %806 = vmatpush1.bf16.msra.mxu0 %v587
    %807 = vmatprep.subr.bf16.mxu0 %v590
    %808 = vmatpush1.bf16.msra.mxu0 %v589
    %809 = vmatprep.subr.bf16.mxu0 %v592
    %810 = vmatpush1.bf16.msra.mxu0 %v591
    %811 = vmatprep.subr.bf16.mxu0 %v594
    %812 = vmatpush1.bf16.msra.mxu0 %v593
    %813 = vmatprep.mubr.bf16.mxu0 %v93
    %814 = vmatmul.mubr.bf16.gmra.mrb[0].mxu0 %v92
    %v815 = vpop.f32.mrb[0].mxu0
    %v816 = vadd.f32 %v775, %v815
    %v817 = vpop.f32.mrb[0].mxu0
    %v818 = vadd.f32 %v777, %v817
    %v819 = vpop.f32.mrb[0].mxu0
    %v820 = vpop.f32.mrb[0].mxu0
    %821 = vdwg.mxu0
    %822 = vmatprep.subr.bf16.mxu0 %v596
    %823 = vmatpush1.bf16.msra.mxu0 %v595
    %824 = vmatprep.subr.bf16.mxu0 0
    %825 = vmatpush1.bf16.msra.mxu0 0
    %826 = vmatprep.subr.bf16.mxu0 0
    %827 = vmatpush1.bf16.msra.mxu0 0
    %828 = vmatprep.subr.bf16.mxu0 0
    %829 = vmatpush1.bf16.msra.mxu0 0
    %830 = vmatprep.subr.bf16.mxu0 0
    %831 = vmatpush1.bf16.msra.mxu0 0
    %832 = vmatprep.subr.bf16.mxu0 0
    %833 = vmatpush1.bf16.msra.mxu0 0
    %834 = vmatprep.subr.bf16.mxu0 0
    %835 = vmatpush1.bf16.msra.mxu0 0
    %836 = vmatprep.subr.bf16.mxu0 0
    %837 = vmatpush1.bf16.msra.mxu0 0
    %838 = vmatprep.subr.bf16.mxu0 0
    %839 = vmatpush1.bf16.msra.mxu0 0
    %840 = vmatprep.subr.bf16.mxu0 0
    %841 = vmatpush1.bf16.msra.mxu0 0
    %842 = vmatprep.subr.bf16.mxu0 0
    %843 = vmatpush1.bf16.msra.mxu0 0
    %844 = vmatprep.subr.bf16.mxu0 0
    %845 = vmatpush1.bf16.msra.mxu0 0
    %846 = vmatprep.subr.bf16.mxu0 0
    %847 = vmatpush1.bf16.msra.mxu0 0
    %848 = vmatprep.subr.bf16.mxu0 0
    %849 = vmatpush1.bf16.msra.mxu0 0
    %850 = vmatprep.subr.bf16.mxu0 0
    %851 = vmatpush1.bf16.msra.mxu0 0
    %852 = vmatprep.subr.bf16.mxu0 0
    %853 = vmatpush1.bf16.msra.mxu0 0
    %854 = vmatprep.mubr.bf16.mxu0 0
    %855 = vmatmul.mubr.bf16.gmra.mrb[0].mxu0 %v697
    %v856 = vpop.f32.mrb[0].mxu0
    %v857 = vadd.f32 %v816, %v856
    %v858 = vpop.f32.mrb[0].mxu0
    %v859 = vadd.f32 %v818, %v858
    %v860 = vpop.f32.mrb[0].mxu0
    %v861 = vpop.f32.mrb[0].mxu0
    %862 = vdwg.mxu0
    %v863 = vmax.f32 %v857, 0.0
    %v864 = vmax.f32 %v859, 0.0
    %v865 = vpack.c.bf16 %v863, %v863
    %v866 = vpack.c.bf16 %v864, %v864
    %v867 = vld [vmem:[#allocation5 + $0x8] sm:$0xff]
    %v868 = vld [vmem:[#allocation5 + $0x18] sm:$0xff]
    %v869 = vld [vmem:[#allocation5 + $0x28] sm:$0xff]
    %v870 = vld [vmem:[#allocation5 + $0x38] sm:$0xff]
    %v871 = vld [vmem:[#allocation5 + $0x48] sm:$0xff]
    %v872 = vld [vmem:[#allocation5 + $0x58] sm:$0xff]
    %v873 = vld [vmem:[#allocation5 + $0x68] sm:$0xff]
    %v874 = vld [vmem:[#allocation5 + $0x78] sm:$0xff]
    %v875 = vld [vmem:[#allocation5 + $0x88] sm:$0xff]
    %v876 = vld [vmem:[#allocation5 + $0x98] sm:$0xff]
    %v877 = vld [vmem:[#allocation5 + $0xa8] sm:$0xff]
    %v878 = vld [vmem:[#allocation5 + $0xb8] sm:$0xff]
    %v879 = vld [vmem:[#allocation5 + $0xc8] sm:$0xff]
    %v880 = vld [vmem:[#allocation5 + $0xd8] sm:$0xff]
    %v881 = vld [vmem:[#allocation5 + $0xe8] sm:$0xff]
    %v882 = vld [vmem:[#allocation5 + $0xf8] sm:$0xff]
    %v883 = vld [vmem:[#allocation5 + $0x108] sm:$0xff]
    %v884 = vld [vmem:[#allocation5 + $0x118] sm:$0xff]
    %v885 = vld [vmem:[#allocation5 + $0x128] sm:$0xff]
    %v886 = vld [vmem:[#allocation5 + $0x138] sm:$0xff]
    %v887 = vld [vmem:[#allocation5 + $0x148] sm:$0xff]
    %v888 = vld [vmem:[#allocation5 + $0x158] sm:$0xff]
    %v889 = vld [vmem:[#allocation5 + $0x168] sm:$0xff]
    %v890 = vld [vmem:[#allocation5 + $0x178] sm:$0xff]
    %v891 = vld [vmem:[#allocation5 + $0x188] sm:$0xff]
    %v892 = vld [vmem:[#allocation5 + $0x198] sm:$0xff]
    %v893 = vld [vmem:[#allocation5 + $0x1a8] sm:$0xff]
    %v894 = vld [vmem:[#allocation5 + $0x1b8] sm:$0xff]
    %v895 = vld [vmem:[#allocation5 + $0x1c8] sm:$0xff]
    %v896 = vld [vmem:[#allocation5 + $0x1d8] sm:$0xff]
    %v897 = vld [vmem:[#allocation5 + $0x1e8] sm:$0xff]
    %v898 = vld [vmem:[#allocation5 + $0x1f8] sm:$0xff]
    %v899 = vld [vmem:[#allocation5 + $0x208] sm:$0xff]
    %v900 = vld [vmem:[#allocation5 + $0x218] sm:$0xff]
    %v901 = vld [vmem:[#allocation5 + $0x228] sm:$0xff]
    %v902 = vld [vmem:[#allocation5 + $0x238] sm:$0xff]
    %v903 = vld [vmem:[#allocation5 + $0x248] sm:$0xff]
    %v904 = vld [vmem:[#allocation5 + $0x258] sm:$0xff]
    %v905 = vld [vmem:[#allocation5 + $0x268] sm:$0xff]
    %v906 = vld [vmem:[#allocation5 + $0x278] sm:$0xff]
    %v907 = vld [vmem:[#allocation5 + $0x288] sm:$0xff]
    %v908 = vld [vmem:[#allocation5 + $0x298] sm:$0xff]
    %v909 = vld [vmem:[#allocation5 + $0x2a8] sm:$0xff]
    %v910 = vld [vmem:[#allocation5 + $0x2b8] sm:$0xff]
    %v911 = vld [vmem:[#allocation5 + $0x2c8] sm:$0xff]
    %v912 = vld [vmem:[#allocation5 + $0x2d8] sm:$0xff]
    %v913 = vld [vmem:[#allocation5 + $0x2e8] sm:$0xff]
    %v914 = vld [vmem:[#allocation5 + $0x2f8] sm:$0xff]
    %v915 = vld [vmem:[#allocation5 + $0x308] sm:$0xff]
    %v916 = vld [vmem:[#allocation5 + $0x318] sm:$0xff]
    %v917 = vld [vmem:[#allocation5 + $0x328] sm:$0xff]
    %v918 = vld [vmem:[#allocation5 + $0x338] sm:$0xff]
    %v919 = vld [vmem:[#allocation5 + $0x348] sm:$0xff]
    %v920 = vld [vmem:[#allocation5 + $0x358] sm:$0xff]
    %v921 = vld [vmem:[#allocation5 + $0x368] sm:$0xff]
    %v922 = vld [vmem:[#allocation5 + $0x378] sm:$0xff]
    %v923 = vld [vmem:[#allocation5 + $0x388] sm:$0xff]
    %v924 = vld [vmem:[#allocation5 + $0x398] sm:$0xff]
    %v925 = vld [vmem:[#allocation5 + $0x3a8] sm:$0xff]
    %v926 = vld [vmem:[#allocation5 + $0x3b8] sm:$0xff]
    %v927 = vld [vmem:[#allocation5 + $0x3c8] sm:$0xff]
    %v928 = vld [vmem:[#allocation5 + $0x3d8] sm:$0xff]
    %v929 = vld [vmem:[#allocation5 + $0x3e8] sm:$0xff]
    %v930 = vld [vmem:[#allocation5 + $0x3f8] sm:$0xff]
    %v931 = vld [vmem:[#allocation5 + $0x408] sm:$0xff]
    %v932 = vld [vmem:[#allocation5 + $0x418] sm:$0xff]
    %v933 = vld [vmem:[#allocation5 + $0x428] sm:$0xff]
    %v934 = vld [vmem:[#allocation5 + $0x438] sm:$0xff]
    %v935 = vld [vmem:[#allocation5 + $0x448] sm:$0xff]
    %v936 = vld [vmem:[#allocation5 + $0x458] sm:$0xff]
    %v937 = vld [vmem:[#allocation5 + $0x468] sm:$0xff]
    %v938 = vld [vmem:[#allocation5 + $0x478] sm:$0xff]
    %v939 = vld [vmem:[#allocation5 + $0x488] sm:$0xff]
    %v940 = vld [vmem:[#allocation5 + $0x498] sm:$0xff]
    %v941 = vld [vmem:[#allocation5 + $0x4a8] sm:$0xff]
    %v942 = vld [vmem:[#allocation5 + $0x4b8] sm:$0xff]
    %v943 = vld [vmem:[#allocation5 + $0x4c8] sm:$0xff]
    %v944 = vld [vmem:[#allocation5 + $0x4d8] sm:$0xff]
    %v945 = vld [vmem:[#allocation5 + $0x4e8] sm:$0xff]
    %v946 = vld [vmem:[#allocation5 + $0x4f8] sm:$0xff]
    %v947 = vld [vmem:[#allocation5 + $0x508] sm:$0xff]
    %v948 = vld [vmem:[#allocation5 + $0x518] sm:$0xff]
    %v949 = vld [vmem:[#allocation5 + $0x528] sm:$0xff]
    %v950 = vld [vmem:[#allocation5 + $0x538] sm:$0xff]
    %v951 = vld [vmem:[#allocation5 + $0x548] sm:$0xff]
    %v952 = vld [vmem:[#allocation5 + $0x558] sm:$0xff]
    %v953 = vld [vmem:[#allocation5 + $0x568] sm:$0xff]
    %v954 = vld [vmem:[#allocation5 + $0x578] sm:$0xff]
    %v955 = vld [vmem:[#allocation5 + $0x588] sm:$0xff]
    %v956 = vld [vmem:[#allocation5 + $0x598] sm:$0xff]
    %v957 = vld [vmem:[#allocation5 + $0x5a8] sm:$0xff]
    %v958 = vld [vmem:[#allocation5 + $0x5b8] sm:$0xff]
    %v959 = vld [vmem:[#allocation5 + $0x5c8] sm:$0xff]
    %v960 = vld [vmem:[#allocation5 + $0x5d8] sm:$0xff]
    %v961 = vld [vmem:[#allocation5 + $0x5e8] sm:$0xff]
    %v962 = vld [vmem:[#allocation5 + $0x5f8] sm:$0xff]
    %v963 = vld [vmem:[#allocation5 + $0x608] sm:$0xff]
    %v964 = vld [vmem:[#allocation5 + $0x618] sm:$0xff]
    %v965 = vld [vmem:[%s2 + $0x2] sm:$0x3]
    %v967 = vlaneseq
    %v968 = vshrl.u32 %v967, 7
    %v969 = vsub.s32 0, %v968
    %v970 = vrot.slane %v965, %v969
    %v971 = vlaneseq
    %v972 = vshrl.u32 %v971, 7
    %v973 = vsub.s32 1, %v972
    %v974 = vrot.slane %v965, %v973
    %v1075 = vunpack.c.l.b16 %v867
    %v1076 = vunpack.c.h.b16 %v867
    %v1077 = vunpack.c.l.b16 %v868
    %v1078 = vunpack.c.h.b16 %v868
    %v1079 = vunpack.c.l.b16 %v869
    %v1080 = vunpack.c.h.b16 %v869
    %v1081 = vunpack.c.l.b16 %v870
    %v1082 = vunpack.c.h.b16 %v870
    %v1083 = vunpack.c.l.b16 %v871
    %v1084 = vunpack.c.h.b16 %v871
    %v1085 = vunpack.c.l.b16 %v872
    %v1086 = vunpack.c.h.b16 %v872
    %v1087 = vunpack.c.l.b16 %v873
    %v1088 = vunpack.c.h.b16 %v873
    %v1089 = vunpack.c.l.b16 %v874
    %v1090 = vunpack.c.h.b16 %v874
    %v1091 = vunpack.c.l.b16 %v875
    %v1092 = vunpack.c.h.b16 %v875
    %v1093 = vunpack.c.l.b16 %v876
    %v1094 = vunpack.c.h.b16 %v876
    %v1095 = vunpack.c.l.b16 %v877
    %v1096 = vunpack.c.h.b16 %v877
    %v1097 = vunpack.c.l.b16 %v878
    %v1098 = vunpack.c.h.b16 %v878
    %v1099 = vunpack.c.l.b16 %v879
    %v1100 = vunpack.c.h.b16 %v879
    %v1101 = vunpack.c.l.b16 %v880
    %v1102 = vunpack.c.h.b16 %v880
    %v1103 = vunpack.c.l.b16 %v881
    %v1104 = vunpack.c.h.b16 %v881
    %v1105 = vunpack.c.l.b16 %v882
    %v1106 = vunpack.c.h.b16 %v882
    %v1107 = vunpack.c.l.b16 %v883
    %v1108 = vunpack.c.h.b16 %v883
    %v1109 = vunpack.c.l.b16 %v884
    %v1110 = vunpack.c.h.b16 %v884
    %v1111 = vunpack.c.l.b16 %v885
    %v1112 = vunpack.c.h.b16 %v885
    %v1113 = vunpack.c.l.b16 %v886
    %v1114 = vunpack.c.h.b16 %v886
    %v1115 = vunpack.c.l.b16 %v887
    %v1116 = vunpack.c.h.b16 %v887
    %v1117 = vunpack.c.l.b16 %v888
    %v1118 = vunpack.c.h.b16 %v888
    %v1119 = vunpack.c.l.b16 %v889
    %v1120 = vunpack.c.h.b16 %v889
    %v1121 = vunpack.c.l.b16 %v890
    %v1122 = vunpack.c.h.b16 %v890
    %v1123 = vunpack.c.l.b16 %v891
    %v1124 = vunpack.c.h.b16 %v891
    %v1125 = vunpack.c.l.b16 %v892
    %v1126 = vunpack.c.h.b16 %v892
    %v1127 = vunpack.c.l.b16 %v893
    %v1128 = vunpack.c.h.b16 %v893
    %v1129 = vunpack.c.l.b16 %v894
    %v1130 = vunpack.c.h.b16 %v894
    %v1131 = vunpack.c.l.b16 %v895
    %v1132 = vunpack.c.h.b16 %v895
    %v1133 = vunpack.c.l.b16 %v896
    %v1134 = vunpack.c.h.b16 %v896
    %v1135 = vunpack.c.l.b16 %v897
    %v1136 = vunpack.c.h.b16 %v897
    %v1137 = vunpack.c.l.b16 %v898
    %v1138 = vunpack.c.h.b16 %v898
    %v1139 = vunpack.c.l.b16 %v899
    %v1140 = vunpack.c.h.b16 %v899
    %v1141 = vunpack.c.l.b16 %v900
    %v1142 = vunpack.c.h.b16 %v900
    %v1143 = vunpack.c.l.b16 %v901
    %v1144 = vunpack.c.h.b16 %v901
    %v1145 = vunpack.c.l.b16 %v902
    %v1146 = vunpack.c.h.b16 %v902
    %v1147 = vunpack.c.l.b16 %v903
    %v1148 = vunpack.c.h.b16 %v903
    %v1149 = vunpack.c.l.b16 %v904
    %v1150 = vunpack.c.h.b16 %v904
    %v1151 = vunpack.c.l.b16 %v905
    %v1152 = vunpack.c.h.b16 %v905
    %v1153 = vunpack.c.l.b16 %v906
    %v1154 = vunpack.c.h.b16 %v906
    %v1155 = vunpack.c.l.b16 %v907
    %v1156 = vunpack.c.h.b16 %v907
    %v1157 = vunpack.c.l.b16 %v908
    %v1158 = vunpack.c.h.b16 %v908
    %v1159 = vunpack.c.l.b16 %v909
    %v1160 = vunpack.c.h.b16 %v909
    %v1161 = vunpack.c.l.b16 %v910
    %v1162 = vunpack.c.h.b16 %v910
    %v1163 = vunpack.c.l.b16 %v911
    %v1164 = vunpack.c.h.b16 %v911
    %v1165 = vunpack.c.l.b16 %v912
    %v1166 = vunpack.c.h.b16 %v912
    %v1167 = vunpack.c.l.b16 %v913
    %v1168 = vunpack.c.h.b16 %v913
    %v1169 = vunpack.c.l.b16 %v914
    %v1170 = vunpack.c.h.b16 %v914
    %v1171 = vunpack.c.l.b16 %v915
    %v1172 = vunpack.c.h.b16 %v915
    %v1173 = vunpack.c.l.b16 %v916
    %v1174 = vunpack.c.h.b16 %v916
    %v1175 = vunpack.c.l.b16 %v917
    %v1176 = vunpack.c.h.b16 %v917
    %v1177 = vunpack.c.l.b16 %v918
    %v1178 = vunpack.c.h.b16 %v918
    %v1179 = vunpack.c.l.b16 %v919
    %v1180 = vunpack.c.h.b16 %v919
    %v1181 = vunpack.c.l.b16 %v920
    %v1182 = vunpack.c.h.b16 %v920
    %v1183 = vunpack.c.l.b16 %v921
    %v1184 = vunpack.c.h.b16 %v921
    %v1185 = vunpack.c.l.b16 %v922
    %v1186 = vunpack.c.h.b16 %v922
    %v1187 = vunpack.c.l.b16 %v923
    %v1188 = vunpack.c.h.b16 %v923
    %v1189 = vunpack.c.l.b16 %v924
    %v1190 = vunpack.c.h.b16 %v924
    %v1191 = vunpack.c.l.b16 %v925
    %v1192 = vunpack.c.h.b16 %v925
    %v1193 = vunpack.c.l.b16 %v926
    %v1194 = vunpack.c.h.b16 %v926
    %v1195 = vunpack.c.l.b16 %v927
    %v1196 = vunpack.c.h.b16 %v927
    %v1197 = vunpack.c.l.b16 %v928
    %v1198 = vunpack.c.h.b16 %v928
    %v1199 = vunpack.c.l.b16 %v929
    %v1200 = vunpack.c.h.b16 %v929
    %v1201 = vunpack.c.l.b16 %v930
    %v1202 = vunpack.c.h.b16 %v930
    %v1203 = vunpack.c.l.b16 %v931
    %v1204 = vunpack.c.h.b16 %v931
    %v1205 = vunpack.c.l.b16 %v932
    %v1206 = vunpack.c.h.b16 %v932
    %v1207 = vunpack.c.l.b16 %v933
    %v1208 = vunpack.c.h.b16 %v933
    %v1209 = vunpack.c.l.b16 %v934
    %v1210 = vunpack.c.h.b16 %v934
    %v1211 = vunpack.c.l.b16 %v935
    %v1212 = vunpack.c.h.b16 %v935
    %v1213 = vunpack.c.l.b16 %v936
    %v1214 = vunpack.c.h.b16 %v936
    %v1215 = vunpack.c.l.b16 %v937
    %v1216 = vunpack.c.h.b16 %v937
    %v1217 = vunpack.c.l.b16 %v938
    %v1218 = vunpack.c.h.b16 %v938
    %v1219 = vunpack.c.l.b16 %v939
    %v1220 = vunpack.c.h.b16 %v939
    %v1221 = vunpack.c.l.b16 %v940
    %v1222 = vunpack.c.h.b16 %v940
    %v1223 = vunpack.c.l.b16 %v941
    %v1224 = vunpack.c.h.b16 %v941
    %v1225 = vunpack.c.l.b16 %v942
    %v1226 = vunpack.c.h.b16 %v942
    %v1227 = vunpack.c.l.b16 %v943
    %v1228 = vunpack.c.h.b16 %v943
    %v1229 = vunpack.c.l.b16 %v944
    %v1230 = vunpack.c.h.b16 %v944
    %v1231 = vunpack.c.l.b16 %v945
    %v1232 = vunpack.c.h.b16 %v945
    %v1233 = vunpack.c.l.b16 %v946
    %v1234 = vunpack.c.h.b16 %v946
    %v1235 = vunpack.c.l.b16 %v947
    %v1236 = vunpack.c.h.b16 %v947
    %v1237 = vunpack.c.l.b16 %v948
    %v1238 = vunpack.c.h.b16 %v948
    %v1239 = vunpack.c.l.b16 %v949
    %v1240 = vunpack.c.h.b16 %v949
    %v1241 = vunpack.c.l.b16 %v950
    %v1242 = vunpack.c.h.b16 %v950
    %v1243 = vunpack.c.l.b16 %v951
    %v1244 = vunpack.c.h.b16 %v951
    %v1245 = vunpack.c.l.b16 %v952
    %v1246 = vunpack.c.h.b16 %v952
    %v1247 = vunpack.c.l.b16 %v953
    %v1248 = vunpack.c.h.b16 %v953
    %v1249 = vunpack.c.l.b16 %v954
    %v1250 = vunpack.c.h.b16 %v954
    %v1251 = vunpack.c.l.b16 %v955
    %v1252 = vunpack.c.h.b16 %v955
    %v1253 = vunpack.c.l.b16 %v956
    %v1254 = vunpack.c.h.b16 %v956
    %v1255 = vunpack.c.l.b16 %v957
    %v1256 = vunpack.c.h.b16 %v957
    %v1257 = vunpack.c.l.b16 %v958
    %v1258 = vunpack.c.h.b16 %v958
    %v1259 = vunpack.c.l.b16 %v959
    %v1260 = vunpack.c.h.b16 %v959
    %v1261 = vunpack.c.l.b16 %v960
    %v1262 = vunpack.c.h.b16 %v960
    %v1263 = vunpack.c.l.b16 %v961
    %v1264 = vunpack.c.h.b16 %v961
    %v1265 = vunpack.c.l.b16 %v962
    %v1266 = vunpack.c.h.b16 %v962
    %v1267 = vunpack.c.l.b16 %v963
    %v1268 = vunpack.c.h.b16 %v963
    %v1269 = vunpack.c.l.b16 %v964
    %v1270 = vunpack.c.h.b16 %v964
    %v1271 = vpack.c.b16 %v1077, %v1075
    %v1272 = vpack.c.b16 %v1078, %v1076
    %v1273 = vpack.c.b16 %v1081, %v1079
    %v1274 = vpack.c.b16 %v1082, %v1080
    %v1275 = vpack.c.b16 %v1085, %v1083
    %v1276 = vpack.c.b16 %v1086, %v1084
    %v1277 = vpack.c.b16 %v1089, %v1087
    %v1278 = vpack.c.b16 %v1090, %v1088
    %v1279 = vpack.c.b16 %v1093, %v1091
    %v1280 = vpack.c.b16 %v1094, %v1092
    %v1281 = vpack.c.b16 %v1097, %v1095
    %v1282 = vpack.c.b16 %v1098, %v1096
    %v1283 = vpack.c.b16 %v1101, %v1099
    %v1284 = vpack.c.b16 %v1102, %v1100
    %v1285 = vpack.c.b16 %v1105, %v1103
    %v1286 = vpack.c.b16 %v1106, %v1104
    %v1287 = vpack.c.b16 %v1109, %v1107
    %v1288 = vpack.c.b16 %v1110, %v1108
    %v1289 = vpack.c.b16 %v1113, %v1111
    %v1290 = vpack.c.b16 %v1114, %v1112
    %v1291 = vpack.c.b16 %v1117, %v1115
    %v1292 = vpack.c.b16 %v1118, %v1116
    %v1293 = vpack.c.b16 %v1121, %v1119
    %v1294 = vpack.c.b16 %v1122, %v1120
    %v1295 = vpack.c.b16 %v1125, %v1123
    %v1296 = vpack.c.b16 %v1126, %v1124
    %v1297 = vpack.c.b16 %v1129, %v1127
    %v1298 = vpack.c.b16 %v1130, %v1128
    %v1299 = vpack.c.b16 %v1133, %v1131
    %v1300 = vpack.c.b16 %v1134, %v1132
    %v1301 = vpack.c.b16 %v1137, %v1135
    %v1302 = vpack.c.b16 %v1138, %v1136
    %v1303 = vpack.c.b16 %v1141, %v1139
    %v1304 = vpack.c.b16 %v1142, %v1140
    %v1305 = vpack.c.b16 %v1145, %v1143
    %v1306 = vpack.c.b16 %v1146, %v1144
    %v1307 = vpack.c.b16 %v1149, %v1147
    %v1308 = vpack.c.b16 %v1150, %v1148
    %v1309 = vpack.c.b16 %v1153, %v1151
    %v1310 = vpack.c.b16 %v1154, %v1152
    %v1311 = vpack.c.b16 %v1157, %v1155
    %v1312 = vpack.c.b16 %v1158, %v1156
    %v1313 = vpack.c.b16 %v1161, %v1159
    %v1314 = vpack.c.b16 %v1162, %v1160
    %v1315 = vpack.c.b16 %v1165, %v1163
    %v1316 = vpack.c.b16 %v1166, %v1164
    %v1317 = vpack.c.b16 %v1169, %v1167
    %v1318 = vpack.c.b16 %v1170, %v1168
    %v1319 = vpack.c.b16 %v1173, %v1171
    %v1320 = vpack.c.b16 %v1174, %v1172
    %v1321 = vpack.c.b16 %v1177, %v1175
    %v1322 = vpack.c.b16 %v1178, %v1176
    %v1323 = vpack.c.b16 %v1181, %v1179
    %v1324 = vpack.c.b16 %v1182, %v1180
    %v1325 = vpack.c.b16 %v1185, %v1183
    %v1326 = vpack.c.b16 %v1186, %v1184
    %v1327 = vpack.c.b16 %v1189, %v1187
    %v1328 = vpack.c.b16 %v1190, %v1188
    %v1329 = vpack.c.b16 %v1193, %v1191
    %v1330 = vpack.c.b16 %v1194, %v1192
    %v1331 = vpack.c.b16 %v1197, %v1195
    %v1332 = vpack.c.b16 %v1198, %v1196
    %v1333 = vpack.c.b16 %v1201, %v1199
    %v1334 = vpack.c.b16 %v1202, %v1200
    %v1335 = vpack.c.b16 %v1205, %v1203
    %v1336 = vpack.c.b16 %v1206, %v1204
    %v1337 = vpack.c.b16 %v1209, %v1207
    %v1338 = vpack.c.b16 %v1210, %v1208
    %v1339 = vpack.c.b16 %v1213, %v1211
    %v1340 = vpack.c.b16 %v1214, %v1212
    %v1341 = vpack.c.b16 %v1217, %v1215
    %v1342 = vpack.c.b16 %v1218, %v1216
    %v1343 = vpack.c.b16 %v1221, %v1219
    %v1344 = vpack.c.b16 %v1222, %v1220
    %v1345 = vpack.c.b16 %v1225, %v1223
    %v1346 = vpack.c.b16 %v1226, %v1224
    %v1347 = vpack.c.b16 %v1229, %v1227
    %v1348 = vpack.c.b16 %v1230, %v1228
    %v1349 = vpack.c.b16 %v1233, %v1231
    %v1350 = vpack.c.b16 %v1234, %v1232
    %v1351 = vpack.c.b16 %v1237, %v1235
    %v1352 = vpack.c.b16 %v1238, %v1236
    %v1353 = vpack.c.b16 %v1241, %v1239
    %v1354 = vpack.c.b16 %v1242, %v1240
    %v1355 = vpack.c.b16 %v1245, %v1243
    %v1356 = vpack.c.b16 %v1246, %v1244
    %v1357 = vpack.c.b16 %v1249, %v1247
    %v1358 = vpack.c.b16 %v1250, %v1248
    %v1359 = vpack.c.b16 %v1253, %v1251
    %v1360 = vpack.c.b16 %v1254, %v1252
    %v1361 = vpack.c.b16 %v1257, %v1255
    %v1362 = vpack.c.b16 %v1258, %v1256
    %v1363 = vpack.c.b16 %v1261, %v1259
    %v1364 = vpack.c.b16 %v1262, %v1260
    %v1365 = vpack.c.b16 %v1265, %v1263
    %v1366 = vpack.c.b16 %v1266, %v1264
    %v1367 = vpack.c.b16 %v1269, %v1267
    %v1368 = vpack.c.b16 %v1270, %v1268
    %1467 = vmatprep.subr.bf16.mxu0 %v1272
    %1468 = vmatpush1.bf16.msra.mxu0 %v1271
    %1469 = vmatprep.subr.bf16.mxu0 %v1274
    %1470 = vmatpush1.bf16.msra.mxu0 %v1273
    %1471 = vmatprep.subr.bf16.mxu0 %v1276
    %1472 = vmatpush1.bf16.msra.mxu0 %v1275
    %1473 = vmatprep.subr.bf16.mxu0 %v1278
    %1474 = vmatpush1.bf16.msra.mxu0 %v1277
    %1475 = vmatprep.subr.bf16.mxu0 %v1280
    %1476 = vmatpush1.bf16.msra.mxu0 %v1279
    %1477 = vmatprep.subr.bf16.mxu0 %v1282
    %1478 = vmatpush1.bf16.msra.mxu0 %v1281
    %1479 = vmatprep.subr.bf16.mxu0 %v1284
    %1480 = vmatpush1.bf16.msra.mxu0 %v1283
    %1481 = vmatprep.subr.bf16.mxu0 %v1286
    %1482 = vmatpush1.bf16.msra.mxu0 %v1285
    %1483 = vmatprep.subr.bf16.mxu0 %v1288
    %1484 = vmatpush1.bf16.msra.mxu0 %v1287
    %1485 = vmatprep.subr.bf16.mxu0 %v1290
    %1486 = vmatpush1.bf16.msra.mxu0 %v1289
    %1487 = vmatprep.subr.bf16.mxu0 %v1292
    %1488 = vmatpush1.bf16.msra.mxu0 %v1291
    %1489 = vmatprep.subr.bf16.mxu0 %v1294
    %1490 = vmatpush1.bf16.msra.mxu0 %v1293
    %1491 = vmatprep.subr.bf16.mxu0 %v1296
    %1492 = vmatpush1.bf16.msra.mxu0 %v1295
    %1493 = vmatprep.subr.bf16.mxu0 %v1298
    %1494 = vmatpush1.bf16.msra.mxu0 %v1297
    %1495 = vmatprep.subr.bf16.mxu0 %v1300
    %1496 = vmatpush1.bf16.msra.mxu0 %v1299
    %1497 = vmatprep.subr.bf16.mxu0 %v1302
    %1498 = vmatpush1.bf16.msra.mxu0 %v1301
    %1499 = vmatprep.mubr.bf16.mxu0 %v89
    %1500 = vmatmul.mubr.bf16.gmra.mrb[0].mxu0 %v88
    %v1501 = vpop.f32.mrb[0].mxu0
    %v1502 = vadd.f32 %v970, %v1501
    %v1503 = vpop.f32.mrb[0].mxu0
    %v1504 = vadd.f32 %v974, %v1503
    %v1505 = vpop.f32.mrb[0].mxu0
    %v1506 = vpop.f32.mrb[0].mxu0
    %1507 = vdwg.mxu0
    %1508 = vmatprep.subr.bf16.mxu0 %v1304
    %1509 = vmatpush1.bf16.msra.mxu0 %v1303
    %1510 = vmatprep.subr.bf16.mxu0 %v1306
    %1511 = vmatpush1.bf16.msra.mxu0 %v1305
    %1512 = vmatprep.subr.bf16.mxu0 %v1308
    %1513 = vmatpush1.bf16.msra.mxu0 %v1307
    %1514 = vmatprep.subr.bf16.mxu0 %v1310
    %1515 = vmatpush1.bf16.msra.mxu0 %v1309
    %1516 = vmatprep.subr.bf16.mxu0 %v1312
    %1517 = vmatpush1.bf16.msra.mxu0 %v1311
    %1518 = vmatprep.subr.bf16.mxu0 %v1314
    %1519 = vmatpush1.bf16.msra.mxu0 %v1313
    %1520 = vmatprep.subr.bf16.mxu0 %v1316
    %1521 = vmatpush1.bf16.msra.mxu0 %v1315
    %1522 = vmatprep.subr.bf16.mxu0 %v1318
    %1523 = vmatpush1.bf16.msra.mxu0 %v1317
    %1524 = vmatprep.subr.bf16.mxu0 %v1320
    %1525 = vmatpush1.bf16.msra.mxu0 %v1319
    %1526 = vmatprep.subr.bf16.mxu0 %v1322
    %1527 = vmatpush1.bf16.msra.mxu0 %v1321
    %1528 = vmatprep.subr.bf16.mxu0 %v1324
    %1529 = vmatpush1.bf16.msra.mxu0 %v1323
    %1530 = vmatprep.subr.bf16.mxu0 %v1326
    %1531 = vmatpush1.bf16.msra.mxu0 %v1325
    %1532 = vmatprep.subr.bf16.mxu0 %v1328
    %1533 = vmatpush1.bf16.msra.mxu0 %v1327
    %1534 = vmatprep.subr.bf16.mxu0 %v1330
    %1535 = vmatpush1.bf16.msra.mxu0 %v1329
    %1536 = vmatprep.subr.bf16.mxu0 %v1332
    %1537 = vmatpush1.bf16.msra.mxu0 %v1331
    %1538 = vmatprep.subr.bf16.mxu0 %v1334
    %1539 = vmatpush1.bf16.msra.mxu0 %v1333
    %1540 = vmatprep.mubr.bf16.mxu0 %v91
    %1541 = vmatmul.mubr.bf16.gmra.mrb[0].mxu0 %v90
    %v1542 = vpop.f32.mrb[0].mxu0
    %v1543 = vadd.f32 %v1502, %v1542
    %v1544 = vpop.f32.mrb[0].mxu0
    %v1545 = vadd.f32 %v1504, %v1544
    %v1546 = vpop.f32.mrb[0].mxu0
    %v1547 = vpop.f32.mrb[0].mxu0
    %1548 = vdwg.mxu0
    %1549 = vmatprep.subr.bf16.mxu0 %v1336
    %1550 = vmatpush1.bf16.msra.mxu0 %v1335
    %1551 = vmatprep.subr.bf16.mxu0 %v1338
    %1552 = vmatpush1.bf16.msra.mxu0 %v1337
    %1553 = vmatprep.subr.bf16.mxu0 %v1340
    %1554 = vmatpush1.bf16.msra.mxu0 %v1339
    %1555 = vmatprep.subr.bf16.mxu0 %v1342
    %1556 = vmatpush1.bf16.msra.mxu0 %v1341
    %1557 = vmatprep.subr.bf16.mxu0 %v1344
    %1558 = vmatpush1.bf16.msra.mxu0 %v1343
    %1559 = vmatprep.subr.bf16.mxu0 %v1346
    %1560 = vmatpush1.bf16.msra.mxu0 %v1345
    %1561 = vmatprep.subr.bf16.mxu0 %v1348
    %1562 = vmatpush1.bf16.msra.mxu0 %v1347
    %1563 = vmatprep.subr.bf16.mxu0 %v1350
    %1564 = vmatpush1.bf16.msra.mxu0 %v1349
    %1565 = vmatprep.subr.bf16.mxu0 %v1352
    %1566 = vmatpush1.bf16.msra.mxu0 %v1351
    %1567 = vmatprep.subr.bf16.mxu0 %v1354
    %1568 = vmatpush1.bf16.msra.mxu0 %v1353
    %1569 = vmatprep.subr.bf16.mxu0 %v1356
    %1570 = vmatpush1.bf16.msra.mxu0 %v1355
    %1571 = vmatprep.subr.bf16.mxu0 %v1358
    %1572 = vmatpush1.bf16.msra.mxu0 %v1357
    %1573 = vmatprep.subr.bf16.mxu0 %v1360
    %1574 = vmatpush1.bf16.msra.mxu0 %v1359
    %1575 = vmatprep.subr.bf16.mxu0 %v1362
    %1576 = vmatpush1.bf16.msra.mxu0 %v1361
    %1577 = vmatprep.subr.bf16.mxu0 %v1364
    %1578 = vmatpush1.bf16.msra.mxu0 %v1363
    %1579 = vmatprep.subr.bf16.mxu0 %v1366
    %1580 = vmatpush1.bf16.msra.mxu0 %v1365
    %1581 = vmatprep.mubr.bf16.mxu0 %v93
    %1582 = vmatmul.mubr.bf16.gmra.mrb[0].mxu0 %v92
    %v1583 = vpop.f32.mrb[0].mxu0
    %v1584 = vadd.f32 %v1543, %v1583
    %v1585 = vpop.f32.mrb[0].mxu0
    %v1586 = vadd.f32 %v1545, %v1585
    %v1587 = vpop.f32.mrb[0].mxu0
    %v1588 = vpop.f32.mrb[0].mxu0
    %1589 = vdwg.mxu0
    %1590 = vmatprep.subr.bf16.mxu0 %v1368
    %1591 = vmatpush1.bf16.msra.mxu0 %v1367
    %1592 = vmatprep.subr.bf16.mxu0 0
    %1593 = vmatpush1.bf16.msra.mxu0 0
    %1594 = vmatprep.subr.bf16.mxu0 0
    %1595 = vmatpush1.bf16.msra.mxu0 0
    %1596 = vmatprep.subr.bf16.mxu0 0
    %1597 = vmatpush1.bf16.msra.mxu0 0
    %1598 = vmatprep.subr.bf16.mxu0 0
    %1599 = vmatpush1.bf16.msra.mxu0 0
    %1600 = vmatprep.subr.bf16.mxu0 0
    %1601 = vmatpush1.bf16.msra.mxu0 0
    %1602 = vmatprep.subr.bf16.mxu0 0
    %1603 = vmatpush1.bf16.msra.mxu0 0
    %1604 = vmatprep.subr.bf16.mxu0 0
    %1605 = vmatpush1.bf16.msra.mxu0 0
    %1606 = vmatprep.subr.bf16.mxu0 0
    %1607 = vmatpush1.bf16.msra.mxu0 0
    %1608 = vmatprep.subr.bf16.mxu0 0
    %1609 = vmatpush1.bf16.msra.mxu0 0
    %1610 = vmatprep.subr.bf16.mxu0 0
    %1611 = vmatpush1.bf16.msra.mxu0 0
    %1612 = vmatprep.subr.bf16.mxu0 0
    %1613 = vmatpush1.bf16.msra.mxu0 0
    %1614 = vmatprep.subr.bf16.mxu0 0
    %1615 = vmatpush1.bf16.msra.mxu0 0
    %1616 = vmatprep.subr.bf16.mxu0 0
    %1617 = vmatpush1.bf16.msra.mxu0 0
    %1618 = vmatprep.subr.bf16.mxu0 0
    %1619 = vmatpush1.bf16.msra.mxu0 0
    %1620 = vmatprep.subr.bf16.mxu0 0
    %1621 = vmatpush1.bf16.msra.mxu0 0
    %1622 = vmatprep.mubr.bf16.mxu0 0
    %1623 = vmatmul.mubr.bf16.gmra.mrb[0].mxu0 %v697
    %v1624 = vpop.f32.mrb[0].mxu0
    %v1625 = vadd.f32 %v1584, %v1624
    %v1626 = vpop.f32.mrb[0].mxu0
    %v1627 = vadd.f32 %v1586, %v1626
    %v1628 = vpop.f32.mrb[0].mxu0
    %v1629 = vpop.f32.mrb[0].mxu0
    %1630 = vdwg.mxu0
    %v1631 = vmax.f32 %v1625, 0.0
    %v1632 = vmax.f32 %v1627, 0.0
    %v1633 = vpack.c.bf16 %v1631, %v1631
    %v1634 = vpack.c.bf16 %v1632, %v1632
    %v1635 = vld [vmem:[#allocation7] sm:$0xff]
    %v1636 = vld [vmem:[#allocation7 + $0x10] sm:$0xff]
    %v1637 = vld [vmem:[#allocation7 + $0x20] sm:$0xff]
    %v1638 = vld [vmem:[#allocation7 + $0x30] sm:$0xff]
    %v1639 = vld [vmem:[#allocation7 + $0x40] sm:$0xff]
    %v1640 = vld [vmem:[#allocation7 + $0x50] sm:$0xff]
    %v1641 = vld [vmem:[#allocation7 + $0x60] sm:$0xff]
    %v1642 = vld [vmem:[#allocation7 + $0x70] sm:$0xff]
    %v1643 = vld [vmem:[#allocation7 + $0x80] sm:$0xff]
    %v1644 = vld [vmem:[#allocation7 + $0x90] sm:$0xff]
    %v1645 = vld [vmem:[#allocation7 + $0xa0] sm:$0xff]
    %v1646 = vld [vmem:[#allocation7 + $0xb0] sm:$0xff]
    %v1647 = vld [vmem:[#allocation7 + $0xc0] sm:$0xff]
    %v1648 = vld [vmem:[#allocation7 + $0xd0] sm:$0xff]
    %v1649 = vld [vmem:[#allocation7 + $0xe0] sm:$0xff]
    %v1650 = vld [vmem:[#allocation7 + $0xf0] sm:$0xff]
    %v1651 = vld [vmem:[#allocation7 + $0x100] sm:$0xff]
    %v1652 = vld [vmem:[#allocation7 + $0x110] sm:$0xff]
    %v1653 = vld [vmem:[#allocation7 + $0x120] sm:$0xff]
    %v1654 = vld [vmem:[#allocation7 + $0x130] sm:$0xff]
    %v1655 = vld [vmem:[#allocation7 + $0x140] sm:$0xff]
    %v1656 = vld [vmem:[#allocation7 + $0x150] sm:$0xff]
    %v1657 = vld [vmem:[#allocation7 + $0x160] sm:$0xff]
    %v1658 = vld [vmem:[#allocation7 + $0x170] sm:$0xff]
    %v1659 = vld [vmem:[#allocation7 + $0x180] sm:$0xff]
    %v1660 = vld [vmem:[#allocation7 + $0x190] sm:$0xff]
    %v1661 = vld [vmem:[#allocation7 + $0x1a0] sm:$0xff]
    %v1662 = vld [vmem:[#allocation7 + $0x1b0] sm:$0xff]
    %v1663 = vld [vmem:[#allocation7 + $0x1c0] sm:$0xff]
    %v1664 = vld [vmem:[#allocation7 + $0x1d0] sm:$0xff]
    %v1665 = vld [vmem:[#allocation7 + $0x1e0] sm:$0xff]
    %v1666 = vld [vmem:[#allocation7 + $0x1f0] sm:$0xff]
    %v1667 = vld [vmem:[#allocation7 + $0x200] sm:$0xff]
    %v1668 = vld [vmem:[#allocation7 + $0x210] sm:$0xff]
    %v1669 = vld [vmem:[#allocation7 + $0x220] sm:$0xff]
    %v1670 = vld [vmem:[#allocation7 + $0x230] sm:$0xff]
    %v1671 = vld [vmem:[#allocation7 + $0x240] sm:$0xff]
    %v1672 = vld [vmem:[#allocation7 + $0x250] sm:$0xff]
    %v1673 = vld [vmem:[#allocation7 + $0x260] sm:$0xff]
    %v1674 = vld [vmem:[#allocation7 + $0x270] sm:$0xff]
    %v1675 = vld [vmem:[#allocation7 + $0x280] sm:$0xff]
    %v1676 = vld [vmem:[#allocation7 + $0x290] sm:$0xff]
    %v1677 = vld [vmem:[#allocation7 + $0x2a0] sm:$0xff]
    %v1678 = vld [vmem:[#allocation7 + $0x2b0] sm:$0xff]
    %v1679 = vld [vmem:[#allocation7 + $0x2c0] sm:$0xff]
    %v1680 = vld [vmem:[#allocation7 + $0x2d0] sm:$0xff]
    %v1681 = vld [vmem:[#allocation7 + $0x2e0] sm:$0xff]
    %v1682 = vld [vmem:[#allocation7 + $0x2f0] sm:$0xff]
    %v1683 = vld [vmem:[#allocation7 + $0x300] sm:$0xff]
    %v1684 = vld [vmem:[#allocation7 + $0x310] sm:$0xff]
    %v1685 = vld [vmem:[#allocation7 + $0x320] sm:$0xff]
    %v1686 = vld [vmem:[#allocation7 + $0x330] sm:$0xff]
    %v1687 = vld [vmem:[#allocation7 + $0x340] sm:$0xff]
    %v1688 = vld [vmem:[#allocation7 + $0x350] sm:$0xff]
    %v1689 = vld [vmem:[#allocation7 + $0x360] sm:$0xff]
    %v1690 = vld [vmem:[#allocation7 + $0x370] sm:$0xff]
    %v1691 = vld [vmem:[#allocation7 + $0x380] sm:$0xff]
    %v1692 = vld [vmem:[#allocation7 + $0x390] sm:$0xff]
    %v1693 = vld [vmem:[#allocation7 + $0x3a0] sm:$0xff]
    %v1694 = vld [vmem:[#allocation7 + $0x3b0] sm:$0xff]
    %v1695 = vld [vmem:[#allocation7 + $0x3c0] sm:$0xff]
    %v1696 = vld [vmem:[#allocation7 + $0x3d0] sm:$0xff]
    %v1697 = vld [vmem:[#allocation7 + $0x3e0] sm:$0xff]
    %v1698 = vld [vmem:[#allocation7 + $0x3f0] sm:$0xff]
    %v1699 = vld [vmem:[%s4] sm:$0x3]
    %v1701 = vlaneseq
    %v1702 = vshrl.u32 %v1701, 7
    %v1703 = vsub.s32 0, %v1702
    %v1704 = vrot.slane %v1699, %v1703
    %v1705 = vlaneseq
    %v1706 = vshrl.u32 %v1705, 7
    %v1707 = vsub.s32 1, %v1706
    %v1708 = vrot.slane %v1699, %v1707
    %v1775 = vunpack.c.l.b16 %v1635
    %v1776 = vunpack.c.h.b16 %v1635
    %v1777 = vunpack.c.l.b16 %v1636
    %v1778 = vunpack.c.h.b16 %v1636
    %v1779 = vunpack.c.l.b16 %v1637
    %v1780 = vunpack.c.h.b16 %v1637
    %v1781 = vunpack.c.l.b16 %v1638
    %v1782 = vunpack.c.h.b16 %v1638
    %v1783 = vunpack.c.l.b16 %v1639
    %v1784 = vunpack.c.h.b16 %v1639
    %v1785 = vunpack.c.l.b16 %v1640
    %v1786 = vunpack.c.h.b16 %v1640
    %v1787 = vunpack.c.l.b16 %v1641
    %v1788 = vunpack.c.h.b16 %v1641
    %v1789 = vunpack.c.l.b16 %v1642
    %v1790 = vunpack.c.h.b16 %v1642
    %v1791 = vunpack.c.l.b16 %v1643
    %v1792 = vunpack.c.h.b16 %v1643
    %v1793 = vunpack.c.l.b16 %v1644
    %v1794 = vunpack.c.h.b16 %v1644
    %v1795 = vunpack.c.l.b16 %v1645
    %v1796 = vunpack.c.h.b16 %v1645
    %v1797 = vunpack.c.l.b16 %v1646
    %v1798 = vunpack.c.h.b16 %v1646
    %v1799 = vunpack.c.l.b16 %v1647
    %v1800 = vunpack.c.h.b16 %v1647
    %v1801 = vunpack.c.l.b16 %v1648
    %v1802 = vunpack.c.h.b16 %v1648
    %v1803 = vunpack.c.l.b16 %v1649
    %v1804 = vunpack.c.h.b16 %v1649
    %v1805 = vunpack.c.l.b16 %v1650
    %v1806 = vunpack.c.h.b16 %v1650
    %v1807 = vunpack.c.l.b16 %v1651
    %v1808 = vunpack.c.h.b16 %v1651
    %v1809 = vunpack.c.l.b16 %v1652
    %v1810 = vunpack.c.h.b16 %v1652
    %v1811 = vunpack.c.l.b16 %v1653
    %v1812 = vunpack.c.h.b16 %v1653
    %v1813 = vunpack.c.l.b16 %v1654
    %v1814 = vunpack.c.h.b16 %v1654
    %v1815 = vunpack.c.l.b16 %v1655
    %v1816 = vunpack.c.h.b16 %v1655
    %v1817 = vunpack.c.l.b16 %v1656
    %v1818 = vunpack.c.h.b16 %v1656
    %v1819 = vunpack.c.l.b16 %v1657
    %v1820 = vunpack.c.h.b16 %v1657
    %v1821 = vunpack.c.l.b16 %v1658
    %v1822 = vunpack.c.h.b16 %v1658
    %v1823 = vunpack.c.l.b16 %v1659
    %v1824 = vunpack.c.h.b16 %v1659
    %v1825 = vunpack.c.l.b16 %v1660
    %v1826 = vunpack.c.h.b16 %v1660
    %v1827 = vunpack.c.l.b16 %v1661
    %v1828 = vunpack.c.h.b16 %v1661
    %v1829 = vunpack.c.l.b16 %v1662
    %v1830 = vunpack.c.h.b16 %v1662
    %v1831 = vunpack.c.l.b16 %v1663
    %v1832 = vunpack.c.h.b16 %v1663
    %v1833 = vunpack.c.l.b16 %v1664
    %v1834 = vunpack.c.h.b16 %v1664
    %v1835 = vunpack.c.l.b16 %v1665
    %v1836 = vunpack.c.h.b16 %v1665
    %v1837 = vunpack.c.l.b16 %v1666
    %v1838 = vunpack.c.h.b16 %v1666
    %v1839 = vunpack.c.l.b16 %v1667
    %v1840 = vunpack.c.h.b16 %v1667
    %v1841 = vunpack.c.l.b16 %v1668
    %v1842 = vunpack.c.h.b16 %v1668
    %v1843 = vunpack.c.l.b16 %v1669
    %v1844 = vunpack.c.h.b16 %v1669
    %v1845 = vunpack.c.l.b16 %v1670
    %v1846 = vunpack.c.h.b16 %v1670
    %v1847 = vunpack.c.l.b16 %v1671
    %v1848 = vunpack.c.h.b16 %v1671
    %v1849 = vunpack.c.l.b16 %v1672
    %v1850 = vunpack.c.h.b16 %v1672
    %v1851 = vunpack.c.l.b16 %v1673
    %v1852 = vunpack.c.h.b16 %v1673
    %v1853 = vunpack.c.l.b16 %v1674
    %v1854 = vunpack.c.h.b16 %v1674
    %v1855 = vunpack.c.l.b16 %v1675
    %v1856 = vunpack.c.h.b16 %v1675
    %v1857 = vunpack.c.l.b16 %v1676
    %v1858 = vunpack.c.h.b16 %v1676
    %v1859 = vunpack.c.l.b16 %v1677
    %v1860 = vunpack.c.h.b16 %v1677
    %v1861 = vunpack.c.l.b16 %v1678
    %v1862 = vunpack.c.h.b16 %v1678
    %v1863 = vunpack.c.l.b16 %v1679
    %v1864 = vunpack.c.h.b16 %v1679
    %v1865 = vunpack.c.l.b16 %v1680
    %v1866 = vunpack.c.h.b16 %v1680
    %v1867 = vunpack.c.l.b16 %v1681
    %v1868 = vunpack.c.h.b16 %v1681
    %v1869 = vunpack.c.l.b16 %v1682
    %v1870 = vunpack.c.h.b16 %v1682
    %v1871 = vunpack.c.l.b16 %v1683
    %v1872 = vunpack.c.h.b16 %v1683
    %v1873 = vunpack.c.l.b16 %v1684
    %v1874 = vunpack.c.h.b16 %v1684
    %v1875 = vunpack.c.l.b16 %v1685
    %v1876 = vunpack.c.h.b16 %v1685
    %v1877 = vunpack.c.l.b16 %v1686
    %v1878 = vunpack.c.h.b16 %v1686
    %v1879 = vunpack.c.l.b16 %v1687
    %v1880 = vunpack.c.h.b16 %v1687
    %v1881 = vunpack.c.l.b16 %v1688
    %v1882 = vunpack.c.h.b16 %v1688
    %v1883 = vunpack.c.l.b16 %v1689
    %v1884 = vunpack.c.h.b16 %v1689
    %v1885 = vunpack.c.l.b16 %v1690
    %v1886 = vunpack.c.h.b16 %v1690
    %v1887 = vunpack.c.l.b16 %v1691
    %v1888 = vunpack.c.h.b16 %v1691
    %v1889 = vunpack.c.l.b16 %v1692
    %v1890 = vunpack.c.h.b16 %v1692
    %v1891 = vunpack.c.l.b16 %v1693
    %v1892 = vunpack.c.h.b16 %v1693
    %v1893 = vunpack.c.l.b16 %v1694
    %v1894 = vunpack.c.h.b16 %v1694
    %v1895 = vunpack.c.l.b16 %v1695
    %v1896 = vunpack.c.h.b16 %v1695
    %v1897 = vunpack.c.l.b16 %v1696
    %v1898 = vunpack.c.h.b16 %v1696
    %v1899 = vunpack.c.l.b16 %v1697
    %v1900 = vunpack.c.h.b16 %v1697
    %v1901 = vunpack.c.l.b16 %v1698
    %v1902 = vunpack.c.h.b16 %v1698
    %v1903 = vpack.c.b16 %v1777, %v1775
    %v1904 = vpack.c.b16 %v1778, %v1776
    %v1905 = vpack.c.b16 %v1781, %v1779
    %v1906 = vpack.c.b16 %v1782, %v1780
    %v1907 = vpack.c.b16 %v1785, %v1783
    %v1908 = vpack.c.b16 %v1786, %v1784
    %v1909 = vpack.c.b16 %v1789, %v1787
    %v1910 = vpack.c.b16 %v1790, %v1788
    %v1911 = vpack.c.b16 %v1793, %v1791
    %v1912 = vpack.c.b16 %v1794, %v1792
    %v1913 = vpack.c.b16 %v1797, %v1795
    %v1914 = vpack.c.b16 %v1798, %v1796
    %v1915 = vpack.c.b16 %v1801, %v1799
    %v1916 = vpack.c.b16 %v1802, %v1800
    %v1917 = vpack.c.b16 %v1805, %v1803
    %v1918 = vpack.c.b16 %v1806, %v1804
    %v1919 = vpack.c.b16 %v1809, %v1807
    %v1920 = vpack.c.b16 %v1810, %v1808
    %v1921 = vpack.c.b16 %v1813, %v1811
    %v1922 = vpack.c.b16 %v1814, %v1812
    %v1923 = vpack.c.b16 %v1817, %v1815
    %v1924 = vpack.c.b16 %v1818, %v1816
    %v1925 = vpack.c.b16 %v1821, %v1819
    %v1926 = vpack.c.b16 %v1822, %v1820
    %v1927 = vpack.c.b16 %v1825, %v1823
    %v1928 = vpack.c.b16 %v1826, %v1824
    %v1929 = vpack.c.b16 %v1829, %v1827
    %v1930 = vpack.c.b16 %v1830, %v1828
    %v1931 = vpack.c.b16 %v1833, %v1831
    %v1932 = vpack.c.b16 %v1834, %v1832
    %v1933 = vpack.c.b16 %v1837, %v1835
    %v1934 = vpack.c.b16 %v1838, %v1836
    %v1935 = vpack.c.b16 %v1841, %v1839
    %v1936 = vpack.c.b16 %v1842, %v1840
    %v1937 = vpack.c.b16 %v1845, %v1843
    %v1938 = vpack.c.b16 %v1846, %v1844
    %v1939 = vpack.c.b16 %v1849, %v1847
    %v1940 = vpack.c.b16 %v1850, %v1848
    %v1941 = vpack.c.b16 %v1853, %v1851
    %v1942 = vpack.c.b16 %v1854, %v1852
    %v1943 = vpack.c.b16 %v1857, %v1855
    %v1944 = vpack.c.b16 %v1858, %v1856
    %v1945 = vpack.c.b16 %v1861, %v1859
    %v1946 = vpack.c.b16 %v1862, %v1860
    %v1947 = vpack.c.b16 %v1865, %v1863
    %v1948 = vpack.c.b16 %v1866, %v1864
    %v1949 = vpack.c.b16 %v1869, %v1867
    %v1950 = vpack.c.b16 %v1870, %v1868
    %v1951 = vpack.c.b16 %v1873, %v1871
    %v1952 = vpack.c.b16 %v1874, %v1872
    %v1953 = vpack.c.b16 %v1877, %v1875
    %v1954 = vpack.c.b16 %v1878, %v1876
    %v1955 = vpack.c.b16 %v1881, %v1879
    %v1956 = vpack.c.b16 %v1882, %v1880
    %v1957 = vpack.c.b16 %v1885, %v1883
    %v1958 = vpack.c.b16 %v1886, %v1884
    %v1959 = vpack.c.b16 %v1889, %v1887
    %v1960 = vpack.c.b16 %v1890, %v1888
    %v1961 = vpack.c.b16 %v1893, %v1891
    %v1962 = vpack.c.b16 %v1894, %v1892
    %v1963 = vpack.c.b16 %v1897, %v1895
    %v1964 = vpack.c.b16 %v1898, %v1896
    %v1965 = vpack.c.b16 %v1901, %v1899
    %v1966 = vpack.c.b16 %v1902, %v1900
    %2031 = vmatprep.subr.bf16.mxu0 %v1904
    %2032 = vmatpush1.bf16.msra.mxu0 %v1903
    %2033 = vmatprep.subr.bf16.mxu0 %v1906
    %2034 = vmatpush1.bf16.msra.mxu0 %v1905
    %2035 = vmatprep.subr.bf16.mxu0 %v1908
    %2036 = vmatpush1.bf16.msra.mxu0 %v1907
    %2037 = vmatprep.subr.bf16.mxu0 %v1910
    %2038 = vmatpush1.bf16.msra.mxu0 %v1909
    %2039 = vmatprep.subr.bf16.mxu0 %v1912
    %2040 = vmatpush1.bf16.msra.mxu0 %v1911
    %2041 = vmatprep.subr.bf16.mxu0 %v1914
    %2042 = vmatpush1.bf16.msra.mxu0 %v1913
    %2043 = vmatprep.subr.bf16.mxu0 %v1916
    %2044 = vmatpush1.bf16.msra.mxu0 %v1915
    %2045 = vmatprep.subr.bf16.mxu0 %v1918
    %2046 = vmatpush1.bf16.msra.mxu0 %v1917
    %2047 = vmatprep.subr.bf16.mxu0 %v1920
    %2048 = vmatpush1.bf16.msra.mxu0 %v1919
    %2049 = vmatprep.subr.bf16.mxu0 %v1922
    %2050 = vmatpush1.bf16.msra.mxu0 %v1921
    %2051 = vmatprep.subr.bf16.mxu0 %v1924
    %2052 = vmatpush1.bf16.msra.mxu0 %v1923
    %2053 = vmatprep.subr.bf16.mxu0 %v1926
    %2054 = vmatpush1.bf16.msra.mxu0 %v1925
    %2055 = vmatprep.subr.bf16.mxu0 %v1928
    %2056 = vmatpush1.bf16.msra.mxu0 %v1927
    %2057 = vmatprep.subr.bf16.mxu0 %v1930
    %2058 = vmatpush1.bf16.msra.mxu0 %v1929
    %2059 = vmatprep.subr.bf16.mxu0 %v1932
    %2060 = vmatpush1.bf16.msra.mxu0 %v1931
    %2061 = vmatprep.subr.bf16.mxu0 %v1934
    %2062 = vmatpush1.bf16.msra.mxu0 %v1933
    %2063 = vmatprep.mubr.bf16.mxu0 %v866
    %2064 = vmatmul.mubr.bf16.gmra.mrb[0].mxu0 %v865
    %v2065 = vpop.f32.mrb[0].mxu0
    %v2066 = vadd.f32 %v1704, %v2065
    %v2067 = vpop.f32.mrb[0].mxu0
    %v2068 = vadd.f32 %v1708, %v2067
    %v2069 = vpop.f32.mrb[0].mxu0
    %v2070 = vpop.f32.mrb[0].mxu0
    %2071 = vdwg.mxu0
    %2072 = vmatprep.subr.bf16.mxu0 %v1936
    %2073 = vmatpush1.bf16.msra.mxu0 %v1935
    %2074 = vmatprep.subr.bf16.mxu0 %v1938
    %2075 = vmatpush1.bf16.msra.mxu0 %v1937
    %2076 = vmatprep.subr.bf16.mxu0 %v1940
    %2077 = vmatpush1.bf16.msra.mxu0 %v1939
    %2078 = vmatprep.subr.bf16.mxu0 %v1942
    %2079 = vmatpush1.bf16.msra.mxu0 %v1941
    %2080 = vmatprep.subr.bf16.mxu0 %v1944
    %2081 = vmatpush1.bf16.msra.mxu0 %v1943
    %2082 = vmatprep.subr.bf16.mxu0 %v1946
    %2083 = vmatpush1.bf16.msra.mxu0 %v1945
    %2084 = vmatprep.subr.bf16.mxu0 %v1948
    %2085 = vmatpush1.bf16.msra.mxu0 %v1947
    %2086 = vmatprep.subr.bf16.mxu0 %v1950
    %2087 = vmatpush1.bf16.msra.mxu0 %v1949
    %2088 = vmatprep.subr.bf16.mxu0 %v1952
    %2089 = vmatpush1.bf16.msra.mxu0 %v1951
    %2090 = vmatprep.subr.bf16.mxu0 %v1954
    %2091 = vmatpush1.bf16.msra.mxu0 %v1953
    %2092 = vmatprep.subr.bf16.mxu0 %v1956
    %2093 = vmatpush1.bf16.msra.mxu0 %v1955
    %2094 = vmatprep.subr.bf16.mxu0 %v1958
    %2095 = vmatpush1.bf16.msra.mxu0 %v1957
    %2096 = vmatprep.subr.bf16.mxu0 %v1960
    %2097 = vmatpush1.bf16.msra.mxu0 %v1959
    %2098 = vmatprep.subr.bf16.mxu0 %v1962
    %2099 = vmatpush1.bf16.msra.mxu0 %v1961
    %2100 = vmatprep.subr.bf16.mxu0 %v1964
    %2101 = vmatpush1.bf16.msra.mxu0 %v1963
    %2102 = vmatprep.subr.bf16.mxu0 %v1966
    %2103 = vmatpush1.bf16.msra.mxu0 %v1965
    %2104 = vmatprep.mubr.bf16.mxu0 %v1634
    %2105 = vmatmul.mubr.bf16.gmra.mrb[0].mxu0 %v1633
    %v2106 = vpop.f32.mrb[0].mxu0
    %v2107 = vadd.f32 %v2066, %v2106
    %v2108 = vpop.f32.mrb[0].mxu0
    %v2109 = vadd.f32 %v2068, %v2108
    %v2110 = vpop.f32.mrb[0].mxu0
    %v2111 = vpop.f32.mrb[0].mxu0
    %2112 = vdwg.mxu0
    %v2113 = vmax.f32 %v2107, 0.0
    %v2114 = vmax.f32 %v2109, 0.0
    %v2115 = vpack.c.bf16 %v2113, %v2113
    %v2116 = vpack.c.bf16 %v2114, %v2114
    %v2117 = vld [vmem:[#allocation7 + $0x8] sm:$0xff]
    %v2118 = vld [vmem:[#allocation7 + $0x18] sm:$0xff]
    %v2119 = vld [vmem:[#allocation7 + $0x28] sm:$0xff]
    %v2120 = vld [vmem:[#allocation7 + $0x38] sm:$0xff]
    %v2121 = vld [vmem:[#allocation7 + $0x48] sm:$0xff]
    %v2122 = vld [vmem:[#allocation7 + $0x58] sm:$0xff]
    %v2123 = vld [vmem:[#allocation7 + $0x68] sm:$0xff]
    %v2124 = vld [vmem:[#allocation7 + $0x78] sm:$0xff]
    %v2125 = vld [vmem:[#allocation7 + $0x88] sm:$0xff]
    %v2126 = vld [vmem:[#allocation7 + $0x98] sm:$0xff]
    %v2127 = vld [vmem:[#allocation7 + $0xa8] sm:$0xff]
    %v2128 = vld [vmem:[#allocation7 + $0xb8] sm:$0xff]
    %v2129 = vld [vmem:[#allocation7 + $0xc8] sm:$0xff]
    %v2130 = vld [vmem:[#allocation7 + $0xd8] sm:$0xff]
    %v2131 = vld [vmem:[#allocation7 + $0xe8] sm:$0xff]
    %v2132 = vld [vmem:[#allocation7 + $0xf8] sm:$0xff]
    %v2133 = vld [vmem:[#allocation7 + $0x108] sm:$0xff]
    %v2134 = vld [vmem:[#allocation7 + $0x118] sm:$0xff]
    %v2135 = vld [vmem:[#allocation7 + $0x128] sm:$0xff]
    %v2136 = vld [vmem:[#allocation7 + $0x138] sm:$0xff]
    %v2137 = vld [vmem:[#allocation7 + $0x148] sm:$0xff]
    %v2138 = vld [vmem:[#allocation7 + $0x158] sm:$0xff]
    %v2139 = vld [vmem:[#allocation7 + $0x168] sm:$0xff]
    %v2140 = vld [vmem:[#allocation7 + $0x178] sm:$0xff]
    %v2141 = vld [vmem:[#allocation7 + $0x188] sm:$0xff]
    %v2142 = vld [vmem:[#allocation7 + $0x198] sm:$0xff]
    %v2143 = vld [vmem:[#allocation7 + $0x1a8] sm:$0xff]
    %v2144 = vld [vmem:[#allocation7 + $0x1b8] sm:$0xff]
    %v2145 = vld [vmem:[#allocation7 + $0x1c8] sm:$0xff]
    %v2146 = vld [vmem:[#allocation7 + $0x1d8] sm:$0xff]
    %v2147 = vld [vmem:[#allocation7 + $0x1e8] sm:$0xff]
    %v2148 = vld [vmem:[#allocation7 + $0x1f8] sm:$0xff]
    %v2149 = vld [vmem:[#allocation7 + $0x208] sm:$0xff]
    %v2150 = vld [vmem:[#allocation7 + $0x218] sm:$0xff]
    %v2151 = vld [vmem:[#allocation7 + $0x228] sm:$0xff]
    %v2152 = vld [vmem:[#allocation7 + $0x238] sm:$0xff]
    %v2153 = vld [vmem:[#allocation7 + $0x248] sm:$0xff]
    %v2154 = vld [vmem:[#allocation7 + $0x258] sm:$0xff]
    %v2155 = vld [vmem:[#allocation7 + $0x268] sm:$0xff]
    %v2156 = vld [vmem:[#allocation7 + $0x278] sm:$0xff]
    %v2157 = vld [vmem:[#allocation7 + $0x288] sm:$0xff]
    %v2158 = vld [vmem:[#allocation7 + $0x298] sm:$0xff]
    %v2159 = vld [vmem:[#allocation7 + $0x2a8] sm:$0xff]
    %v2160 = vld [vmem:[#allocation7 + $0x2b8] sm:$0xff]
    %v2161 = vld [vmem:[#allocation7 + $0x2c8] sm:$0xff]
    %v2162 = vld [vmem:[#allocation7 + $0x2d8] sm:$0xff]
    %v2163 = vld [vmem:[#allocation7 + $0x2e8] sm:$0xff]
    %v2164 = vld [vmem:[#allocation7 + $0x2f8] sm:$0xff]
    %v2165 = vld [vmem:[#allocation7 + $0x308] sm:$0xff]
    %v2166 = vld [vmem:[#allocation7 + $0x318] sm:$0xff]
    %v2167 = vld [vmem:[#allocation7 + $0x328] sm:$0xff]
    %v2168 = vld [vmem:[#allocation7 + $0x338] sm:$0xff]
    %v2169 = vld [vmem:[#allocation7 + $0x348] sm:$0xff]
    %v2170 = vld [vmem:[#allocation7 + $0x358] sm:$0xff]
    %v2171 = vld [vmem:[#allocation7 + $0x368] sm:$0xff]
    %v2172 = vld [vmem:[#allocation7 + $0x378] sm:$0xff]
    %v2173 = vld [vmem:[#allocation7 + $0x388] sm:$0xff]
    %v2174 = vld [vmem:[#allocation7 + $0x398] sm:$0xff]
    %v2175 = vld [vmem:[#allocation7 + $0x3a8] sm:$0xff]
    %v2176 = vld [vmem:[#allocation7 + $0x3b8] sm:$0xff]
    %v2177 = vld [vmem:[#allocation7 + $0x3c8] sm:$0xff]
    %v2178 = vld [vmem:[#allocation7 + $0x3d8] sm:$0xff]
    %v2179 = vld [vmem:[#allocation7 + $0x3e8] sm:$0xff]
    %v2180 = vld [vmem:[#allocation7 + $0x3f8] sm:$0xff]
    %v2181 = vld [vmem:[%s4 + $0x2] sm:$0x3]
    %v2183 = vlaneseq
    %v2184 = vshrl.u32 %v2183, 7
    %v2185 = vsub.s32 0, %v2184
    %v2186 = vrot.slane %v2181, %v2185
    %v2187 = vlaneseq
    %v2188 = vshrl.u32 %v2187, 7
    %v2189 = vsub.s32 1, %v2188
    %v2190 = vrot.slane %v2181, %v2189
    %v2257 = vunpack.c.l.b16 %v2117
    %v2258 = vunpack.c.h.b16 %v2117
    %v2259 = vunpack.c.l.b16 %v2118
    %v2260 = vunpack.c.h.b16 %v2118
    %v2261 = vunpack.c.l.b16 %v2119
    %v2262 = vunpack.c.h.b16 %v2119
    %v2263 = vunpack.c.l.b16 %v2120
    %v2264 = vunpack.c.h.b16 %v2120
    %v2265 = vunpack.c.l.b16 %v2121
    %v2266 = vunpack.c.h.b16 %v2121
    %v2267 = vunpack.c.l.b16 %v2122
    %v2268 = vunpack.c.h.b16 %v2122
    %v2269 = vunpack.c.l.b16 %v2123
    %v2270 = vunpack.c.h.b16 %v2123
    %v2271 = vunpack.c.l.b16 %v2124
    %v2272 = vunpack.c.h.b16 %v2124
    %v2273 = vunpack.c.l.b16 %v2125
    %v2274 = vunpack.c.h.b16 %v2125
    %v2275 = vunpack.c.l.b16 %v2126
    %v2276 = vunpack.c.h.b16 %v2126
    %v2277 = vunpack.c.l.b16 %v2127
    %v2278 = vunpack.c.h.b16 %v2127
    %v2279 = vunpack.c.l.b16 %v2128
    %v2280 = vunpack.c.h.b16 %v2128
    %v2281 = vunpack.c.l.b16 %v2129
    %v2282 = vunpack.c.h.b16 %v2129
    %v2283 = vunpack.c.l.b16 %v2130
    %v2284 = vunpack.c.h.b16 %v2130
    %v2285 = vunpack.c.l.b16 %v2131
    %v2286 = vunpack.c.h.b16 %v2131
    %v2287 = vunpack.c.l.b16 %v2132
    %v2288 = vunpack.c.h.b16 %v2132
    %v2289 = vunpack.c.l.b16 %v2133
    %v2290 = vunpack.c.h.b16 %v2133
    %v2291 = vunpack.c.l.b16 %v2134
    %v2292 = vunpack.c.h.b16 %v2134
    %v2293 = vunpack.c.l.b16 %v2135
    %v2294 = vunpack.c.h.b16 %v2135
    %v2295 = vunpack.c.l.b16 %v2136
    %v2296 = vunpack.c.h.b16 %v2136
    %v2297 = vunpack.c.l.b16 %v2137
    %v2298 = vunpack.c.h.b16 %v2137
    %v2299 = vunpack.c.l.b16 %v2138
    %v2300 = vunpack.c.h.b16 %v2138
    %v2301 = vunpack.c.l.b16 %v2139
    %v2302 = vunpack.c.h.b16 %v2139
    %v2303 = vunpack.c.l.b16 %v2140
    %v2304 = vunpack.c.h.b16 %v2140
    %v2305 = vunpack.c.l.b16 %v2141
    %v2306 = vunpack.c.h.b16 %v2141
    %v2307 = vunpack.c.l.b16 %v2142
    %v2308 = vunpack.c.h.b16 %v2142
    %v2309 = vunpack.c.l.b16 %v2143
    %v2310 = vunpack.c.h.b16 %v2143
    %v2311 = vunpack.c.l.b16 %v2144
    %v2312 = vunpack.c.h.b16 %v2144
    %v2313 = vunpack.c.l.b16 %v2145
    %v2314 = vunpack.c.h.b16 %v2145
    %v2315 = vunpack.c.l.b16 %v2146
    %v2316 = vunpack.c.h.b16 %v2146
    %v2317 = vunpack.c.l.b16 %v2147
    %v2318 = vunpack.c.h.b16 %v2147
    %v2319 = vunpack.c.l.b16 %v2148
    %v2320 = vunpack.c.h.b16 %v2148
    %v2321 = vunpack.c.l.b16 %v2149
    %v2322 = vunpack.c.h.b16 %v2149
    %v2323 = vunpack.c.l.b16 %v2150
    %v2324 = vunpack.c.h.b16 %v2150
    %v2325 = vunpack.c.l.b16 %v2151
    %v2326 = vunpack.c.h.b16 %v2151
    %v2327 = vunpack.c.l.b16 %v2152
    %v2328 = vunpack.c.h.b16 %v2152
    %v2329 = vunpack.c.l.b16 %v2153
    %v2330 = vunpack.c.h.b16 %v2153
    %v2331 = vunpack.c.l.b16 %v2154
    %v2332 = vunpack.c.h.b16 %v2154
    %v2333 = vunpack.c.l.b16 %v2155
    %v2334 = vunpack.c.h.b16 %v2155
    %v2335 = vunpack.c.l.b16 %v2156
    %v2336 = vunpack.c.h.b16 %v2156
    %v2337 = vunpack.c.l.b16 %v2157
    %v2338 = vunpack.c.h.b16 %v2157
    %v2339 = vunpack.c.l.b16 %v2158
    %v2340 = vunpack.c.h.b16 %v2158
    %v2341 = vunpack.c.l.b16 %v2159
    %v2342 = vunpack.c.h.b16 %v2159
    %v2343 = vunpack.c.l.b16 %v2160
    %v2344 = vunpack.c.h.b16 %v2160
    %v2345 = vunpack.c.l.b16 %v2161
    %v2346 = vunpack.c.h.b16 %v2161
    %v2347 = vunpack.c.l.b16 %v2162
    %v2348 = vunpack.c.h.b16 %v2162
    %v2349 = vunpack.c.l.b16 %v2163
    %v2350 = vunpack.c.h.b16 %v2163
    %v2351 = vunpack.c.l.b16 %v2164
    %v2352 = vunpack.c.h.b16 %v2164
    %v2353 = vunpack.c.l.b16 %v2165
    %v2354 = vunpack.c.h.b16 %v2165
    %v2355 = vunpack.c.l.b16 %v2166
    %v2356 = vunpack.c.h.b16 %v2166
    %v2357 = vunpack.c.l.b16 %v2167
    %v2358 = vunpack.c.h.b16 %v2167
    %v2359 = vunpack.c.l.b16 %v2168
    %v2360 = vunpack.c.h.b16 %v2168
    %v2361 = vunpack.c.l.b16 %v2169
    %v2362 = vunpack.c.h.b16 %v2169
    %v2363 = vunpack.c.l.b16 %v2170
    %v2364 = vunpack.c.h.b16 %v2170
    %v2365 = vunpack.c.l.b16 %v2171
    %v2366 = vunpack.c.h.b16 %v2171
    %v2367 = vunpack.c.l.b16 %v2172
    %v2368 = vunpack.c.h.b16 %v2172
    %v2369 = vunpack.c.l.b16 %v2173
    %v2370 = vunpack.c.h.b16 %v2173
    %v2371 = vunpack.c.l.b16 %v2174
    %v2372 = vunpack.c.h.b16 %v2174
    %v2373 = vunpack.c.l.b16 %v2175
    %v2374 = vunpack.c.h.b16 %v2175
    %v2375 = vunpack.c.l.b16 %v2176
    %v2376 = vunpack.c.h.b16 %v2176
    %v2377 = vunpack.c.l.b16 %v2177
    %v2378 = vunpack.c.h.b16 %v2177
    %v2379 = vunpack.c.l.b16 %v2178
    %v2380 = vunpack.c.h.b16 %v2178
    %v2381 = vunpack.c.l.b16 %v2179
    %v2382 = vunpack.c.h.b16 %v2179
    %v2383 = vunpack.c.l.b16 %v2180
    %v2384 = vunpack.c.h.b16 %v2180
    %v2385 = vpack.c.b16 %v2259, %v2257
    %v2386 = vpack.c.b16 %v2260, %v2258
    %v2387 = vpack.c.b16 %v2263, %v2261
    %v2388 = vpack.c.b16 %v2264, %v2262
    %v2389 = vpack.c.b16 %v2267, %v2265
    %v2390 = vpack.c.b16 %v2268, %v2266
    %v2391 = vpack.c.b16 %v2271, %v2269
    %v2392 = vpack.c.b16 %v2272, %v2270
    %v2393 = vpack.c.b16 %v2275, %v2273
    %v2394 = vpack.c.b16 %v2276, %v2274
    %v2395 = vpack.c.b16 %v2279, %v2277
    %v2396 = vpack.c.b16 %v2280, %v2278
    %v2397 = vpack.c.b16 %v2283, %v2281
    %v2398 = vpack.c.b16 %v2284, %v2282
    %v2399 = vpack.c.b16 %v2287, %v2285
    %v2400 = vpack.c.b16 %v2288, %v2286
    %v2401 = vpack.c.b16 %v2291, %v2289
    %v2402 = vpack.c.b16 %v2292, %v2290
    %v2403 = vpack.c.b16 %v2295, %v2293
    %v2404 = vpack.c.b16 %v2296, %v2294
    %v2405 = vpack.c.b16 %v2299, %v2297
    %v2406 = vpack.c.b16 %v2300, %v2298
    %v2407 = vpack.c.b16 %v2303, %v2301
    %v2408 = vpack.c.b16 %v2304, %v2302
    %v2409 = vpack.c.b16 %v2307, %v2305
    %v2410 = vpack.c.b16 %v2308, %v2306
    %v2411 = vpack.c.b16 %v2311, %v2309
    %v2412 = vpack.c.b16 %v2312, %v2310
    %v2413 = vpack.c.b16 %v2315, %v2313
    %v2414 = vpack.c.b16 %v2316, %v2314
    %v2415 = vpack.c.b16 %v2319, %v2317
    %v2416 = vpack.c.b16 %v2320, %v2318
    %v2417 = vpack.c.b16 %v2323, %v2321
    %v2418 = vpack.c.b16 %v2324, %v2322
    %v2419 = vpack.c.b16 %v2327, %v2325
    %v2420 = vpack.c.b16 %v2328, %v2326
    %v2421 = vpack.c.b16 %v2331, %v2329
    %v2422 = vpack.c.b16 %v2332, %v2330
    %v2423 = vpack.c.b16 %v2335, %v2333
    %v2424 = vpack.c.b16 %v2336, %v2334
    %v2425 = vpack.c.b16 %v2339, %v2337
    %v2426 = vpack.c.b16 %v2340, %v2338
    %v2427 = vpack.c.b16 %v2343, %v2341
    %v2428 = vpack.c.b16 %v2344, %v2342
    %v2429 = vpack.c.b16 %v2347, %v2345
    %v2430 = vpack.c.b16 %v2348, %v2346
    %v2431 = vpack.c.b16 %v2351, %v2349
    %v2432 = vpack.c.b16 %v2352, %v2350
    %v2433 = vpack.c.b16 %v2355, %v2353
    %v2434 = vpack.c.b16 %v2356, %v2354
    %v2435 = vpack.c.b16 %v2359, %v2357
    %v2436 = vpack.c.b16 %v2360, %v2358
    %v2437 = vpack.c.b16 %v2363, %v2361
    %v2438 = vpack.c.b16 %v2364, %v2362
    %v2439 = vpack.c.b16 %v2367, %v2365
    %v2440 = vpack.c.b16 %v2368, %v2366
    %v2441 = vpack.c.b16 %v2371, %v2369
    %v2442 = vpack.c.b16 %v2372, %v2370
    %v2443 = vpack.c.b16 %v2375, %v2373
    %v2444 = vpack.c.b16 %v2376, %v2374
    %v2445 = vpack.c.b16 %v2379, %v2377
    %v2446 = vpack.c.b16 %v2380, %v2378
    %v2447 = vpack.c.b16 %v2383, %v2381
    %v2448 = vpack.c.b16 %v2384, %v2382
    %2513 = vmatprep.subr.bf16.mxu0 %v2386
    %2514 = vmatpush1.bf16.msra.mxu0 %v2385
    %2515 = vmatprep.subr.bf16.mxu0 %v2388
    %2516 = vmatpush1.bf16.msra.mxu0 %v2387
    %2517 = vmatprep.subr.bf16.mxu0 %v2390
    %2518 = vmatpush1.bf16.msra.mxu0 %v2389
    %2519 = vmatprep.subr.bf16.mxu0 %v2392
    %2520 = vmatpush1.bf16.msra.mxu0 %v2391
    %2521 = vmatprep.subr.bf16.mxu0 %v2394
    %2522 = vmatpush1.bf16.msra.mxu0 %v2393
    %2523 = vmatprep.subr.bf16.mxu0 %v2396
    %2524 = vmatpush1.bf16.msra.mxu0 %v2395
    %2525 = vmatprep.subr.bf16.mxu0 %v2398
    %2526 = vmatpush1.bf16.msra.mxu0 %v2397
    %2527 = vmatprep.subr.bf16.mxu0 %v2400
    %2528 = vmatpush1.bf16.msra.mxu0 %v2399
    %2529 = vmatprep.subr.bf16.mxu0 %v2402
    %2530 = vmatpush1.bf16.msra.mxu0 %v2401
    %2531 = vmatprep.subr.bf16.mxu0 %v2404
    %2532 = vmatpush1.bf16.msra.mxu0 %v2403
    %2533 = vmatprep.subr.bf16.mxu0 %v2406
    %2534 = vmatpush1.bf16.msra.mxu0 %v2405
    %2535 = vmatprep.subr.bf16.mxu0 %v2408
    %2536 = vmatpush1.bf16.msra.mxu0 %v2407
    %2537 = vmatprep.subr.bf16.mxu0 %v2410
    %2538 = vmatpush1.bf16.msra.mxu0 %v2409
    %2539 = vmatprep.subr.bf16.mxu0 %v2412
    %2540 = vmatpush1.bf16.msra.mxu0 %v2411
    %2541 = vmatprep.subr.bf16.mxu0 %v2414
    %2542 = vmatpush1.bf16.msra.mxu0 %v2413
    %2543 = vmatprep.subr.bf16.mxu0 %v2416
    %2544 = vmatpush1.bf16.msra.mxu0 %v2415
    %2545 = vmatprep.mubr.bf16.mxu0 %v866
    %2546 = vmatmul.mubr.bf16.gmra.mrb[0].mxu0 %v865
    %v2547 = vpop.f32.mrb[0].mxu0
    %v2548 = vadd.f32 %v2186, %v2547
    %v2549 = vpop.f32.mrb[0].mxu0
    %v2550 = vadd.f32 %v2190, %v2549
    %v2551 = vpop.f32.mrb[0].mxu0
    %v2552 = vpop.f32.mrb[0].mxu0
    %2553 = vdwg.mxu0
    %2554 = vmatprep.subr.bf16.mxu0 %v2418
    %2555 = vmatpush1.bf16.msra.mxu0 %v2417
    %2556 = vmatprep.subr.bf16.mxu0 %v2420
    %2557 = vmatpush1.bf16.msra.mxu0 %v2419
    %2558 = vmatprep.subr.bf16.mxu0 %v2422
    %2559 = vmatpush1.bf16.msra.mxu0 %v2421
    %2560 = vmatprep.subr.bf16.mxu0 %v2424
    %2561 = vmatpush1.bf16.msra.mxu0 %v2423
    %2562 = vmatprep.subr.bf16.mxu0 %v2426
    %2563 = vmatpush1.bf16.msra.mxu0 %v2425
    %2564 = vmatprep.subr.bf16.mxu0 %v2428
    %2565 = vmatpush1.bf16.msra.mxu0 %v2427
    %2566 = vmatprep.subr.bf16.mxu0 %v2430
    %2567 = vmatpush1.bf16.msra.mxu0 %v2429
    %2568 = vmatprep.subr.bf16.mxu0 %v2432
    %2569 = vmatpush1.bf16.msra.mxu0 %v2431
    %2570 = vmatprep.subr.bf16.mxu0 %v2434
    %2571 = vmatpush1.bf16.msra.mxu0 %v2433
    %2572 = vmatprep.subr.bf16.mxu0 %v2436
    %2573 = vmatpush1.bf16.msra.mxu0 %v2435
    %2574 = vmatprep.subr.bf16.mxu0 %v2438
    %2575 = vmatpush1.bf16.msra.mxu0 %v2437
    %2576 = vmatprep.subr.bf16.mxu0 %v2440
    %2577 = vmatpush1.bf16.msra.mxu0 %v2439
    %2578 = vmatprep.subr.bf16.mxu0 %v2442
    %2579 = vmatpush1.bf16.msra.mxu0 %v2441
    %2580 = vmatprep.subr.bf16.mxu0 %v2444
    %2581 = vmatpush1.bf16.msra.mxu0 %v2443
    %2582 = vmatprep.subr.bf16.mxu0 %v2446
    %2583 = vmatpush1.bf16.msra.mxu0 %v2445
    %2584 = vmatprep.subr.bf16.mxu0 %v2448
    %2585 = vmatpush1.bf16.msra.mxu0 %v2447
    %2586 = vmatprep.mubr.bf16.mxu0 %v1634
    %2587 = vmatmul.mubr.bf16.gmra.mrb[0].mxu0 %v1633
    %v2588 = vpop.f32.mrb[0].mxu0
    %v2589 = vadd.f32 %v2548, %v2588
    %v2590 = vpop.f32.mrb[0].mxu0
    %v2591 = vadd.f32 %v2550, %v2590
    %v2592 = vpop.f32.mrb[0].mxu0
    %v2593 = vpop.f32.mrb[0].mxu0
    %2594 = vdwg.mxu0
    %v2595 = vmax.f32 %v2589, 0.0
    %v2596 = vmax.f32 %v2591, 0.0
    %v2597 = vpack.c.bf16 %v2595, %v2595
    %v2598 = vpack.c.bf16 %v2596, %v2596
    %v2599 = vld [vmem:[#allocation8] sm:$0xf]
    %v2600 = vld [vmem:[#allocation8 + $0x4] sm:$0xf]
    %v2601 = vld [vmem:[#allocation8 + $0x8] sm:$0xf]
    %v2602 = vld [vmem:[#allocation8 + $0xc] sm:$0xf]
    %v2603 = vld [vmem:[#allocation8 + $0x10] sm:$0xf]
    %v2604 = vld [vmem:[#allocation8 + $0x14] sm:$0xf]
    %v2605 = vld [vmem:[#allocation8 + $0x18] sm:$0xf]
    %v2606 = vld [vmem:[#allocation8 + $0x1c] sm:$0xf]
    %v2607 = vld [vmem:[#allocation8 + $0x20] sm:$0xf]
    %v2608 = vld [vmem:[#allocation8 + $0x24] sm:$0xf]
    %v2609 = vld [vmem:[#allocation8 + $0x28] sm:$0xf]
    %v2610 = vld [vmem:[#allocation8 + $0x2c] sm:$0xf]
    %v2611 = vld [vmem:[#allocation8 + $0x30] sm:$0xf]
    %v2612 = vld [vmem:[#allocation8 + $0x34] sm:$0xf]
    %v2613 = vld [vmem:[#allocation8 + $0x38] sm:$0xf]
    %v2614 = vld [vmem:[#allocation8 + $0x3c] sm:$0xf]
    %v2615 = vld [vmem:[#allocation8 + $0x40] sm:$0xf]
    %v2616 = vld [vmem:[#allocation8 + $0x44] sm:$0xf]
    %v2617 = vld [vmem:[#allocation8 + $0x48] sm:$0xf]
    %v2618 = vld [vmem:[#allocation8 + $0x4c] sm:$0xf]
    %v2619 = vld [vmem:[#allocation8 + $0x50] sm:$0xf]
    %v2620 = vld [vmem:[#allocation8 + $0x54] sm:$0xf]
    %v2621 = vld [vmem:[#allocation8 + $0x58] sm:$0xf]
    %v2622 = vld [vmem:[#allocation8 + $0x5c] sm:$0xf]
    %v2623 = vld [vmem:[#allocation8 + $0x60] sm:$0xf]
    %v2624 = vld [vmem:[#allocation8 + $0x64] sm:$0xf]
    %v2625 = vld [vmem:[#allocation8 + $0x68] sm:$0xf]
    %v2626 = vld [vmem:[#allocation8 + $0x6c] sm:$0xf]
    %v2627 = vld [vmem:[#allocation8 + $0x70] sm:$0xf]
    %v2628 = vld [vmem:[#allocation8 + $0x74] sm:$0xf]
    %v2629 = vld [vmem:[#allocation8 + $0x78] sm:$0xf]
    %v2630 = vld [vmem:[#allocation8 + $0x7c] sm:$0xf]
    %v2631 = vld [vmem:[#allocation8 + $0x80] sm:$0xf]
    %v2632 = vld [vmem:[#allocation8 + $0x84] sm:$0xf]
    %v2633 = vld [vmem:[#allocation8 + $0x88] sm:$0xf]
    %v2634 = vld [vmem:[#allocation8 + $0x8c] sm:$0xf]
    %v2635 = vld [vmem:[#allocation8 + $0x90] sm:$0xf]
    %v2636 = vld [vmem:[#allocation8 + $0x94] sm:$0xf]
    %v2637 = vld [vmem:[#allocation8 + $0x98] sm:$0xf]
    %v2638 = vld [vmem:[#allocation8 + $0x9c] sm:$0xf]
    %v2639 = vld [vmem:[#allocation8 + $0xa0] sm:$0xf]
    %v2640 = vld [vmem:[#allocation8 + $0xa4] sm:$0xf]
    %v2641 = vld [vmem:[#allocation8 + $0xa8] sm:$0xf]
    %v2642 = vld [vmem:[#allocation8 + $0xac] sm:$0xf]
    %v2643 = vld [vmem:[#allocation8 + $0xb0] sm:$0xf]
    %v2644 = vld [vmem:[#allocation8 + $0xb4] sm:$0xf]
    %v2645 = vld [vmem:[#allocation8 + $0xb8] sm:$0xf]
    %v2646 = vld [vmem:[#allocation8 + $0xbc] sm:$0xf]
    %v2647 = vld [vmem:[#allocation8 + $0xc0] sm:$0xf]
    %v2648 = vld [vmem:[#allocation8 + $0xc4] sm:$0xf]
    %v2649 = vld [vmem:[#allocation8 + $0xc8] sm:$0xf]
    %v2650 = vld [vmem:[#allocation8 + $0xcc] sm:$0xf]
    %v2651 = vld [vmem:[#allocation8 + $0xd0] sm:$0xf]
    %v2652 = vld [vmem:[#allocation8 + $0xd4] sm:$0xf]
    %v2653 = vld [vmem:[#allocation8 + $0xd8] sm:$0xf]
    %v2654 = vld [vmem:[#allocation8 + $0xdc] sm:$0xf]
    %v2655 = vld [vmem:[#allocation8 + $0xe0] sm:$0xf]
    %v2656 = vld [vmem:[#allocation8 + $0xe4] sm:$0xf]
    %v2657 = vld [vmem:[#allocation8 + $0xe8] sm:$0xf]
    %v2658 = vld [vmem:[#allocation8 + $0xec] sm:$0xf]
    %v2659 = vld [vmem:[#allocation8 + $0xf0] sm:$0xf]
    %v2660 = vld [vmem:[#allocation8 + $0xf4] sm:$0xf]
    %v2661 = vld [vmem:[#allocation8 + $0xf8] sm:$0xf]
    %v2662 = vld [vmem:[#allocation8 + $0xfc] sm:$0xf]
    %v2663 = vld [vmem:[%s6] sm:$0x1]
    %v2665 = vlaneseq
    %v2666 = vshrl.u32 %v2665, 7
    %v2667 = vsub.s32 0, %v2666
    %v2668 = vrot.slane %v2663, %v2667
    %v2734 = vunpack.c.l.b16 %v2599
    %v2735 = vunpack.c.l.b16 %v2600
    %v2736 = vunpack.c.l.b16 %v2601
    %v2737 = vunpack.c.l.b16 %v2602
    %v2738 = vunpack.c.l.b16 %v2603
    %v2739 = vunpack.c.l.b16 %v2604
    %v2740 = vunpack.c.l.b16 %v2605
    %v2741 = vunpack.c.l.b16 %v2606
    %v2742 = vunpack.c.l.b16 %v2607
    %v2743 = vunpack.c.l.b16 %v2608
    %v2744 = vunpack.c.l.b16 %v2609
    %v2745 = vunpack.c.l.b16 %v2610
    %v2746 = vunpack.c.l.b16 %v2611
    %v2747 = vunpack.c.l.b16 %v2612
    %v2748 = vunpack.c.l.b16 %v2613
    %v2749 = vunpack.c.l.b16 %v2614
    %v2750 = vunpack.c.l.b16 %v2615
    %v2751 = vunpack.c.l.b16 %v2616
    %v2752 = vunpack.c.l.b16 %v2617
    %v2753 = vunpack.c.l.b16 %v2618
    %v2754 = vunpack.c.l.b16 %v2619
    %v2755 = vunpack.c.l.b16 %v2620
    %v2756 = vunpack.c.l.b16 %v2621
    %v2757 = vunpack.c.l.b16 %v2622
    %v2758 = vunpack.c.l.b16 %v2623
    %v2759 = vunpack.c.l.b16 %v2624
    %v2760 = vunpack.c.l.b16 %v2625
    %v2761 = vunpack.c.l.b16 %v2626
    %v2762 = vunpack.c.l.b16 %v2627
    %v2763 = vunpack.c.l.b16 %v2628
    %v2764 = vunpack.c.l.b16 %v2629
    %v2765 = vunpack.c.l.b16 %v2630
    %v2766 = vunpack.c.l.b16 %v2631
    %v2767 = vunpack.c.l.b16 %v2632
    %v2768 = vunpack.c.l.b16 %v2633
    %v2769 = vunpack.c.l.b16 %v2634
    %v2770 = vunpack.c.l.b16 %v2635
    %v2771 = vunpack.c.l.b16 %v2636
    %v2772 = vunpack.c.l.b16 %v2637
    %v2773 = vunpack.c.l.b16 %v2638
    %v2774 = vunpack.c.l.b16 %v2639
    %v2775 = vunpack.c.l.b16 %v2640
    %v2776 = vunpack.c.l.b16 %v2641
    %v2777 = vunpack.c.l.b16 %v2642
    %v2778 = vunpack.c.l.b16 %v2643
    %v2779 = vunpack.c.l.b16 %v2644
    %v2780 = vunpack.c.l.b16 %v2645
    %v2781 = vunpack.c.l.b16 %v2646
    %v2782 = vunpack.c.l.b16 %v2647
    %v2783 = vunpack.c.l.b16 %v2648
    %v2784 = vunpack.c.l.b16 %v2649
    %v2785 = vunpack.c.l.b16 %v2650
    %v2786 = vunpack.c.l.b16 %v2651
    %v2787 = vunpack.c.l.b16 %v2652
    %v2788 = vunpack.c.l.b16 %v2653
    %v2789 = vunpack.c.l.b16 %v2654
    %v2790 = vunpack.c.l.b16 %v2655
    %v2791 = vunpack.c.l.b16 %v2656
    %v2792 = vunpack.c.l.b16 %v2657
    %v2793 = vunpack.c.l.b16 %v2658
    %v2794 = vunpack.c.l.b16 %v2659
    %v2795 = vunpack.c.l.b16 %v2660
    %v2796 = vunpack.c.l.b16 %v2661
    %v2797 = vunpack.c.l.b16 %v2662
    %v2798 = vpack.c.b16 %v2735, %v2734
    %v2799 = vpack.c.b16 %v2737, %v2736
    %v2800 = vpack.c.b16 %v2739, %v2738
    %v2801 = vpack.c.b16 %v2741, %v2740
    %v2802 = vpack.c.b16 %v2743, %v2742
    %v2803 = vpack.c.b16 %v2745, %v2744
    %v2804 = vpack.c.b16 %v2747, %v2746
    %v2805 = vpack.c.b16 %v2749, %v2748
    %v2806 = vpack.c.b16 %v2751, %v2750
    %v2807 = vpack.c.b16 %v2753, %v2752
    %v2808 = vpack.c.b16 %v2755, %v2754
    %v2809 = vpack.c.b16 %v2757, %v2756
    %v2810 = vpack.c.b16 %v2759, %v2758
    %v2811 = vpack.c.b16 %v2761, %v2760
    %v2812 = vpack.c.b16 %v2763, %v2762
    %v2813 = vpack.c.b16 %v2765, %v2764
    %v2814 = vpack.c.b16 %v2767, %v2766
    %v2815 = vpack.c.b16 %v2769, %v2768
    %v2816 = vpack.c.b16 %v2771, %v2770
    %v2817 = vpack.c.b16 %v2773, %v2772
    %v2818 = vpack.c.b16 %v2775, %v2774
    %v2819 = vpack.c.b16 %v2777, %v2776
    %v2820 = vpack.c.b16 %v2779, %v2778
    %v2821 = vpack.c.b16 %v2781, %v2780
    %v2822 = vpack.c.b16 %v2783, %v2782
    %v2823 = vpack.c.b16 %v2785, %v2784
    %v2824 = vpack.c.b16 %v2787, %v2786
    %v2825 = vpack.c.b16 %v2789, %v2788
    %v2826 = vpack.c.b16 %v2791, %v2790
    %v2827 = vpack.c.b16 %v2793, %v2792
    %v2828 = vpack.c.b16 %v2795, %v2794
    %v2829 = vpack.c.b16 %v2797, %v2796
    %2862 = vmatprep.subr.bf16.mxu0 0
    %2863 = vmatpush1.bf16.msra.mxu0 %v2798
    %2864 = vmatprep.subr.bf16.mxu0 0
    %2865 = vmatpush1.bf16.msra.mxu0 %v2799
    %2866 = vmatprep.subr.bf16.mxu0 0
    %2867 = vmatpush1.bf16.msra.mxu0 %v2800
    %2868 = vmatprep.subr.bf16.mxu0 0
    %2869 = vmatpush1.bf16.msra.mxu0 %v2801
    %2870 = vmatprep.subr.bf16.mxu0 0
    %2871 = vmatpush1.bf16.msra.mxu0 %v2802
    %2872 = vmatprep.subr.bf16.mxu0 0
    %2873 = vmatpush1.bf16.msra.mxu0 %v2803
    %2874 = vmatprep.subr.bf16.mxu0 0
    %2875 = vmatpush1.bf16.msra.mxu0 %v2804
    %2876 = vmatprep.subr.bf16.mxu0 0
    %2877 = vmatpush1.bf16.msra.mxu0 %v2805
    %2878 = vmatprep.subr.bf16.mxu0 0
    %2879 = vmatpush1.bf16.msra.mxu0 %v2806
    %2880 = vmatprep.subr.bf16.mxu0 0
    %2881 = vmatpush1.bf16.msra.mxu0 %v2807
    %2882 = vmatprep.subr.bf16.mxu0 0
    %2883 = vmatpush1.bf16.msra.mxu0 %v2808
    %2884 = vmatprep.subr.bf16.mxu0 0
    %2885 = vmatpush1.bf16.msra.mxu0 %v2809
    %2886 = vmatprep.subr.bf16.mxu0 0
    %2887 = vmatpush1.bf16.msra.mxu0 %v2810
    %2888 = vmatprep.subr.bf16.mxu0 0
    %2889 = vmatpush1.bf16.msra.mxu0 %v2811
    %2890 = vmatprep.subr.bf16.mxu0 0
    %2891 = vmatpush1.bf16.msra.mxu0 %v2812
    %2892 = vmatprep.subr.bf16.mxu0 0
    %2893 = vmatpush1.bf16.msra.mxu0 %v2813
    %2894 = vmatprep.mubr.bf16.mxu0 %v2116
    %2895 = vmatmul.mubr.bf16.gmra.mrb[0].mxu0 %v2115
    %v2896 = vpop.f32.mrb[0].mxu0
    %v2897 = vadd.f32 %v2668, %v2896
    %v2898 = vpop.f32.mrb[0].mxu0
    %v2899 = vpop.f32.mrb[0].mxu0
    %v2900 = vpop.f32.mrb[0].mxu0
    %2901 = vdwg.mxu0
    %2902 = vmatprep.subr.bf16.mxu0 0
    %2903 = vmatpush1.bf16.msra.mxu0 %v2814
    %2904 = vmatprep.subr.bf16.mxu0 0
    %2905 = vmatpush1.bf16.msra.mxu0 %v2815
    %2906 = vmatprep.subr.bf16.mxu0 0
    %2907 = vmatpush1.bf16.msra.mxu0 %v2816
    %2908 = vmatprep.subr.bf16.mxu0 0
    %2909 = vmatpush1.bf16.msra.mxu0 %v2817
    %2910 = vmatprep.subr.bf16.mxu0 0
    %2911 = vmatpush1.bf16.msra.mxu0 %v2818
    %2912 = vmatprep.subr.bf16.mxu0 0
    %2913 = vmatpush1.bf16.msra.mxu0 %v2819
    %2914 = vmatprep.subr.bf16.mxu0 0
    %2915 = vmatpush1.bf16.msra.mxu0 %v2820
    %2916 = vmatprep.subr.bf16.mxu0 0
    %2917 = vmatpush1.bf16.msra.mxu0 %v2821
    %2918 = vmatprep.subr.bf16.mxu0 0
    %2919 = vmatpush1.bf16.msra.mxu0 %v2822
    %2920 = vmatprep.subr.bf16.mxu0 0
    %2921 = vmatpush1.bf16.msra.mxu0 %v2823
    %2922 = vmatprep.subr.bf16.mxu0 0
    %2923 = vmatpush1.bf16.msra.mxu0 %v2824
    %2924 = vmatprep.subr.bf16.mxu0 0
    %2925 = vmatpush1.bf16.msra.mxu0 %v2825
    %2926 = vmatprep.subr.bf16.mxu0 0
    %2927 = vmatpush1.bf16.msra.mxu0 %v2826
    %2928 = vmatprep.subr.bf16.mxu0 0
    %2929 = vmatpush1.bf16.msra.mxu0 %v2827
    %2930 = vmatprep.subr.bf16.mxu0 0
    %2931 = vmatpush1.bf16.msra.mxu0 %v2828
    %2932 = vmatprep.subr.bf16.mxu0 0
    %2933 = vmatpush1.bf16.msra.mxu0 %v2829
    %2934 = vmatprep.mubr.bf16.mxu0 %v2598
    %2935 = vmatmul.mubr.bf16.gmra.mrb[0].mxu0 %v2597
    %v2936 = vpop.f32.mrb[0].mxu0
    %v2937 = vadd.f32 %v2897, %v2936
    %v2938 = vpop.f32.mrb[0].mxu0
    %v2939 = vpop.f32.mrb[0].mxu0
    %v2940 = vpop.f32.mrb[0].mxu0
    %2941 = vdwg.mxu0
    %v2942 = vpack.c.bf16 %v2937, %v2937
    %2943 = vst [vmem:[#allocation10] sm:$0xf] %v2942
    // Predicated region
    $region46: #{tpu_custom_call.1} parent=1 // pred_check
      _
    $region47: #{tpu_custom_call.1} parent=1 // pred_check_branch
      %2945 = sbr.rel (0) target = $region49
    $region48: #{tpu_custom_call.1} parent=1 // pred_region
      %s2947 = ssub.s32 64, 64
      %2948 = vsyncadd [#allocation4], %s2947
      %s2950 = sshll.u32 [#allocation10], 4
      %s2951 = int_to_ptr.vmem [resolvable:$true] %s2950
      %2953 = dma.vmem_to_hbm [thread:$0]  %s2951, 64, %s7, [#allocation4]
    $region49: #{tpu_custom_call.1} parent=1 // pred_fallthru
      _
    // Predicated region
    $region50: #{tpu_custom_call.1} parent=1 // pred_check
      _
    $region51: #{tpu_custom_call.1} parent=1 // pred_check_branch
      %2955 = sbr.rel (0) target = $region53
    $region52: #{tpu_custom_call.1} parent=1 // pred_region
      %2956 = dma.done [#allocation4], 64
    $region53: #{tpu_custom_call.1} parent=1 // pred_fallthru
      _
    %2957 = vsyncpa [#allocation3], 1
    %2958 = vsyncpa [#allocation6], 1
    %2959 = vsyncpa [#allocation9], 1
    %2960 = vsyncpa [#allocation4], 1

</llo_original>
